<compile_context>
chip_gen: v5e
topology: v5e:2x2
jax: 0.10.0
libtpu: 0.0.40
codegen_flags: <defaults>
</compile_context>

<pallas_src>
import jax
import jax.numpy as jnp
from jax.experimental import pallas as pl
from jax.experimental.pallas import tpu as pltpu


# ---------------------------------------------------------------------------
# Fused kernel: MaxPool2d(2) -> Conv3x3+BN+ReLU -> Conv3x3+BN+ReLU
# ---------------------------------------------------------------------------
def _downsample_fused_kernel(x_ref, w1_ref, s1_ref, b1_ref,
                             w2_ref, s2_ref, b2_ref, o_ref):
    # x_ref : (1, H, W, Cin)   f32
    # w1_ref: (9*Cin, C)       bf16   (tap-major, input-channel-minor im2col)
    # w2_ref: (9*C,   C)       bf16
    # s*/b* : (1, C)           f32    folded BatchNorm scale / bias
    # o_ref : (1, H2, W2, C)   f32
    _, H, W, Cin = x_ref.shape
    _, H2, W2, C = o_ref.shape
    Hp, Wp = H // 2, W // 2
    H1, W1 = Hp - 2, Wp - 2

    x = x_ref[0]                                           # (H, W, Cin)

    # --- MaxPool2d(kernel_size=2, stride=2), all in VMEM ---------------------
    xw4 = x.reshape(H, Wp, 2, Cin)
    xw = jnp.maximum(xw4[:, :, 0, :], xw4[:, :, 1, :])     # (H,  Wp, Cin)
    xh4 = xw.reshape(Hp, 2, Wp, Cin)
    p = jnp.maximum(xh4[:, 0], xh4[:, 1])                  # (Hp, Wp, Cin)

    # --- Conv1: valid 3x3 as a single im2col matmul (K = 9*Cin) --------------
    pat1 = jnp.concatenate(
        [p[di:di + H1, dj:dj + W1, :] for di in range(3) for dj in range(3)],
        axis=-1)                                           # (H1, W1, 9*Cin)
    y1 = jnp.einsum("hwk,kc->hwc", pat1.astype(jnp.bfloat16), w1_ref[...],
                    preferred_element_type=jnp.float32)    # (H1, W1, C) f32
    y1 = jnp.maximum(y1 * s1_ref[...].reshape(1, 1, C)
                     + b1_ref[...].reshape(1, 1, C), 0.0)  # folded BN + ReLU

    # --- Conv2: valid 3x3 as a single im2col matmul (K = 9*C) ----------------
    pat2 = jnp.concatenate(
        [y1[di:di + H2, dj:dj + W2, :] for di in range(3) for dj in range(3)],
        axis=-1)                                           # (H2, W2, 9*C)
    y2 = jnp.einsum("hwk,kc->hwc", pat2.astype(jnp.bfloat16), w2_ref[...],
                    preferred_element_type=jnp.float32)    # (H2, W2, C) f32
    y2 = jnp.maximum(y2 * s2_ref[...].reshape(1, 1, C)
                     + b2_ref[...].reshape(1, 1, C), 0.0)

    o_ref[0] = y2


# ---------------------------------------------------------------------------
# Wrapper around pallas_call
# ---------------------------------------------------------------------------
def _im2col_weight(w_oihw):
    # torch Conv2d layout (Cout, Cin, 3, 3) -> (3, 3, Cin, Cout) -> (9*Cin, Cout)
    co, ci, kh, kw = w_oihw.shape
    w = jnp.transpose(w_oihw, (2, 3, 1, 0)).reshape(kh * kw * ci, co)
    return w.astype(jnp.bfloat16)          # bf16 MXU operands (f32 accumulation)


def downsample_forward_nhwc(params, x_nhwc):
    """DownSample.forward on NHWC input; returns NHWC output."""
    N, H, W, Cin = x_nhwc.shape
    C = params["c1_w"].shape[0]

    # MaxPool2d(2) floors odd spatial dims, exactly like torch.
    He, We = 2 * (H // 2), 2 * (W // 2)
    if (He, We) != (H, W):
        x_nhwc = x_nhwc[:, :He, :We, :]
    Hp, Wp = He // 2, We // 2
    H1, W1 = Hp - 2, Wp - 2
    H2, W2 = H1 - 2, W1 - 2

    w1 = _im2col_weight(params["c1_w"])                    # (9*Cin, C) bf16
    w2 = _im2col_weight(params["c2_w"])                    # (9*C,   C) bf16
    s1 = params["c1_scale"].reshape(1, C).astype(jnp.float32)
    b1 = params["c1_bias"].reshape(1, C).astype(jnp.float32)
    s2 = params["c2_scale"].reshape(1, C).astype(jnp.float32)
    b2 = params["c2_bias"].reshape(1, C).astype(jnp.float32)

    flops = 2 * N * (H1 * W1 * 9 * Cin * C + H2 * W2 * 9 * C * C)
    bytes_accessed = (N * He * We * Cin * 4 + N * H2 * W2 * C * 4
                      + 2 * (int(w1.size) + int(w2.size)) + 4 * 4 * C)

    return pl.pallas_call(
        _downsample_fused_kernel,
        out_shape=jax.ShapeDtypeStruct((N, H2, W2, C), jnp.float32),
        grid=(N,),
        in_specs=[
            pl.BlockSpec((1, He, We, Cin), lambda n: (n, 0, 0, 0)),
            pl.BlockSpec((9 * Cin, C), lambda n: (0, 0)),
            pl.BlockSpec((1, C), lambda n: (0, 0)),
            pl.BlockSpec((1, C), lambda n: (0, 0)),
            pl.BlockSpec((9 * C, C), lambda n: (0, 0)),
            pl.BlockSpec((1, C), lambda n: (0, 0)),
            pl.BlockSpec((1, C), lambda n: (0, 0)),
        ],
        out_specs=pl.BlockSpec((1, H2, W2, C), lambda n: (n, 0, 0, 0)),
        compiler_params=pltpu.CompilerParams(
            dimension_semantics=("parallel",)),
        cost_estimate=pl.CostEstimate(
            flops=flops, transcendentals=0, bytes_accessed=bytes_accessed),
    )(x_nhwc, w1, s1, b1, w2, s2, b2)


def downsample_forward(params, x_nchw):
    """Torch-layout (NCHW) entry point matching DownSample.forward."""
    # TODO(synk): prefer downsample_forward_nhwc to avoid these two XLA boundary
    # transposes (each a full extra HBM pass at small channel counts).
    x = jnp.transpose(x_nchw, (0, 2, 3, 1))
    y = downsample_forward_nhwc(params, x)
    return jnp.transpose(y, (0, 3, 1, 2))


# ---------------------------------------------------------------------------
# Parameter init (deterministic, torch-layout shapes) + BN folding
# ---------------------------------------------------------------------------
def _fold_bn(conv_b, gamma, beta, mu, var, eps=1e-5):
    scale = gamma / jnp.sqrt(var + eps)
    bias = beta + scale * (conv_b - mu)
    return scale, bias


def init_params(key, in_channels, out_channels):
    ks = jax.random.split(key, 12)

    def rnd(k, shape, s=0.1):
        return s * jax.random.normal(k, shape, jnp.float32)

    p = {}
    # ConvBNAct 1: Conv2d(in, out, 3) + BatchNorm2d(out)
    p["c1_w"] = rnd(ks[0], (out_channels, in_channels, 3, 3))
    c1_b = rnd(ks[1], (out_channels,))
    p["c1_scale"], p["c1_bias"] = _fold_bn(
        c1_b,
        gamma=1.0 + rnd(ks[2], (out_channels,)),
        beta=rnd(ks[3], (out_channels,)),
        mu=rnd(ks[4], (out_channels,)),
        var=1.0 + jnp.abs(rnd(ks[5], (out_channels,))),
    )
    # ConvBNAct 2: Conv2d(out, out, 3) + BatchNorm2d(out)
    p["c2_w"] = rnd(ks[6], (out_channels, out_channels, 3, 3))
    c2_b = rnd(ks[7], (out_channels,))
    p["c2_scale"], p["c2_bias"] = _fold_bn(
        c2_b,
        gamma=1.0 + rnd(ks[8], (out_channels,)),
        beta=rnd(ks[9], (out_channels,)),
        mu=rnd(ks[10], (out_channels,)),
        var=1.0 + jnp.abs(rnd(ks[11], (out_channels,))),
    )
    return p


if __name__ == "__main__":
    key = jax.random.PRNGKey(0)
    N, Cin, Cout = 2, 8, 16
    H = W = 20                 # pool: 20 -> 10, conv1: 10 -> 8, conv2: 8 -> 6

    kx, kp = jax.random.split(key)
    x = jax.random.normal(kx, (N, Cin, H, W), jnp.float32)
    params = init_params(kp, Cin, Cout)

    out = downsample_forward(params, x)
    jax.block_until_ready(out)
    assert out.shape == (N, Cout, 6, 6), out.shape
    print("KERNEL_OK")
</pallas_src>

<mosaic_0001>
module attributes {stable_mosaic.version = 11 : i64} {
  func.func @_downsample_fused_kernel(%arg0: i32, %arg1: memref<1x20x20x8xf32, #tpu.memory_space<vmem>>, %arg2: memref<72x16xbf16, #tpu.memory_space<vmem>>, %arg3: memref<1x16xf32, #tpu.memory_space<vmem>>, %arg4: memref<1x16xf32, #tpu.memory_space<vmem>>, %arg5: memref<144x16xbf16, #tpu.memory_space<vmem>>, %arg6: memref<1x16xf32, #tpu.memory_space<vmem>>, %arg7: memref<1x16xf32, #tpu.memory_space<vmem>>, %arg8: memref<1x6x6x16xf32, #tpu.memory_space<vmem>>) attributes {dimension_semantics = [#tpu.dimension_semantics<parallel>], iteration_bounds = array<i64: 2>, scalar_prefetch = 0 : i64, scratch_operands = 0 : i64, tpu.core_type = #tpu.core_type<tc>, window_params = [{transform_indices = @transform_0, window_bounds = array<i64: 1, 20, 20, 8>}, {pipeline_mode = #tpu.pipeline_mode<synchronous>, transform_indices = @transform_1, window_bounds = array<i64: 72, 16>}, {pipeline_mode = #tpu.pipeline_mode<synchronous>, transform_indices = @transform_2, window_bounds = array<i64: 1, 16>}, {pipeline_mode = #tpu.pipeline_mode<synchronous>, transform_indices = @transform_3, window_bounds = array<i64: 1, 16>}, {pipeline_mode = #tpu.pipeline_mode<synchronous>, transform_indices = @transform_4, window_bounds = array<i64: 144, 16>}, {pipeline_mode = #tpu.pipeline_mode<synchronous>, transform_indices = @transform_5, window_bounds = array<i64: 1, 16>}, {pipeline_mode = #tpu.pipeline_mode<synchronous>, transform_indices = @transform_6, window_bounds = array<i64: 1, 16>}, {transform_indices = @transform_7, window_bounds = array<i64: 1, 6, 6, 16>}]} {
    %c0 = arith.constant 0 : index
    %c0_0 = arith.constant 0 : index
    %c0_1 = arith.constant 0 : index
    %c0_2 = arith.constant 0 : index
    %0 = vector.load %arg1[%c0, %c0_0, %c0_1, %c0_2] : memref<1x20x20x8xf32, #tpu.memory_space<vmem>>, vector<1x20x20x8xf32>
    %1 = vector.shape_cast %0 : vector<1x20x20x8xf32> to vector<20x20x8xf32>
    %2 = vector.shape_cast %1 : vector<20x20x8xf32> to vector<20x10x2x8xf32>
    %3 = vector.extract_strided_slice %2 {offsets = [0, 0, 0, 0], sizes = [20, 10, 1, 8], strides = [1, 1, 1, 1]} : vector<20x10x2x8xf32> to vector<20x10x1x8xf32>
    %4 = vector.shape_cast %3 : vector<20x10x1x8xf32> to vector<20x10x8xf32>
    %5 = vector.extract_strided_slice %2 {offsets = [0, 0, 1, 0], sizes = [20, 10, 1, 8], strides = [1, 1, 1, 1]} : vector<20x10x2x8xf32> to vector<20x10x1x8xf32>
    %6 = vector.shape_cast %5 : vector<20x10x1x8xf32> to vector<20x10x8xf32>
    %7 = arith.maximumf %4, %6 : vector<20x10x8xf32>
    %8 = vector.shape_cast %7 : vector<20x10x8xf32> to vector<10x2x10x8xf32>
    %9 = vector.extract_strided_slice %8 {offsets = [0, 0, 0, 0], sizes = [10, 1, 10, 8], strides = [1, 1, 1, 1]} : vector<10x2x10x8xf32> to vector<10x1x10x8xf32>
    %10 = vector.shape_cast %9 : vector<10x1x10x8xf32> to vector<10x10x8xf32>
    %11 = vector.extract_strided_slice %8 {offsets = [0, 1, 0, 0], sizes = [10, 1, 10, 8], strides = [1, 1, 1, 1]} : vector<10x2x10x8xf32> to vector<10x1x10x8xf32>
    %12 = vector.shape_cast %11 : vector<10x1x10x8xf32> to vector<10x10x8xf32>
    %13 = arith.maximumf %10, %12 : vector<10x10x8xf32>
    %14 = vector.extract_strided_slice %13 {offsets = [0, 0, 0], sizes = [8, 8, 8], strides = [1, 1, 1]} : vector<10x10x8xf32> to vector<8x8x8xf32>
    %15 = vector.extract_strided_slice %13 {offsets = [0, 1, 0], sizes = [8, 8, 8], strides = [1, 1, 1]} : vector<10x10x8xf32> to vector<8x8x8xf32>
    %16 = vector.extract_strided_slice %13 {offsets = [0, 2, 0], sizes = [8, 8, 8], strides = [1, 1, 1]} : vector<10x10x8xf32> to vector<8x8x8xf32>
    %17 = vector.extract_strided_slice %13 {offsets = [1, 0, 0], sizes = [8, 8, 8], strides = [1, 1, 1]} : vector<10x10x8xf32> to vector<8x8x8xf32>
    %18 = vector.extract_strided_slice %13 {offsets = [1, 1, 0], sizes = [8, 8, 8], strides = [1, 1, 1]} : vector<10x10x8xf32> to vector<8x8x8xf32>
    %19 = vector.extract_strided_slice %13 {offsets = [1, 2, 0], sizes = [8, 8, 8], strides = [1, 1, 1]} : vector<10x10x8xf32> to vector<8x8x8xf32>
    %20 = vector.extract_strided_slice %13 {offsets = [2, 0, 0], sizes = [8, 8, 8], strides = [1, 1, 1]} : vector<10x10x8xf32> to vector<8x8x8xf32>
    %21 = vector.extract_strided_slice %13 {offsets = [2, 1, 0], sizes = [8, 8, 8], strides = [1, 1, 1]} : vector<10x10x8xf32> to vector<8x8x8xf32>
    %22 = vector.extract_strided_slice %13 {offsets = [2, 2, 0], sizes = [8, 8, 8], strides = [1, 1, 1]} : vector<10x10x8xf32> to vector<8x8x8xf32>
    %23 = tpu.concatenate %14, %15, %16, %17, %18, %19, %20, %21, %22 in 2 : vector<8x8x8xf32>, vector<8x8x8xf32>, vector<8x8x8xf32>, vector<8x8x8xf32>, vector<8x8x8xf32>, vector<8x8x8xf32>, vector<8x8x8xf32>, vector<8x8x8xf32>, vector<8x8x8xf32> -> vector<8x8x72xf32>
    %24 = arith.truncf %23 : vector<8x8x72xf32> to vector<8x8x72xbf16>
    %c0_3 = arith.constant 0 : index
    %c0_4 = arith.constant 0 : index
    %25 = vector.load %arg2[%c0_3, %c0_4] : memref<72x16xbf16, #tpu.memory_space<vmem>>, vector<72x16xbf16>
    "tpu.trace_start"() <{level = 10 : i32, message = "hwk,kc->hwc"}> : () -> ()
    %cst = arith.constant dense<0.000000e+00> : vector<8x8x16xf32>
    %26 = tpu.matmul %24, %25, %cst {dimension_numbers = #tpu.dot_dimension_numbers<[2], [0], [0, 1], [1], [0, 0, 0, 1, 1, 1], [], []>} : vector<8x8x72xbf16>, vector<72x16xbf16>, vector<8x8x16xf32> -> vector<8x8x16xf32>
    "tpu.trace_stop"() : () -> ()
    %c0_5 = arith.constant 0 : index
    %c0_6 = arith.constant 0 : index
    %27 = vector.load %arg3[%c0_5, %c0_6] : memref<1x16xf32, #tpu.memory_space<vmem>>, vector<1x16xf32>
    %28 = vector.shape_cast %27 : vector<1x16xf32> to vector<1x1x16xf32>
    %29 = vector.broadcast %28 : vector<1x1x16xf32> to vector<8x8x16xf32>
    %30 = arith.mulf %26, %29 : vector<8x8x16xf32>
    %c0_7 = arith.constant 0 : index
    %c0_8 = arith.constant 0 : index
    %31 = vector.load %arg4[%c0_7, %c0_8] : memref<1x16xf32, #tpu.memory_space<vmem>>, vector<1x16xf32>
    %32 = vector.shape_cast %31 : vector<1x16xf32> to vector<1x1x16xf32>
    %33 = vector.broadcast %32 : vector<1x1x16xf32> to vector<8x8x16xf32>
    %34 = arith.addf %30, %33 : vector<8x8x16xf32>
    %cst_9 = arith.constant 0.000000e+00 : f32
    %35 = vector.broadcast %cst_9 : f32 to vector<8x8x16xf32>
    %36 = arith.maximumf %34, %35 : vector<8x8x16xf32>
    %37 = vector.extract_strided_slice %36 {offsets = [0, 0, 0], sizes = [6, 6, 16], strides = [1, 1, 1]} : vector<8x8x16xf32> to vector<6x6x16xf32>
    %38 = vector.extract_strided_slice %36 {offsets = [0, 1, 0], sizes = [6, 6, 16], strides = [1, 1, 1]} : vector<8x8x16xf32> to vector<6x6x16xf32>
    %39 = vector.extract_strided_slice %36 {offsets = [0, 2, 0], sizes = [6, 6, 16], strides = [1, 1, 1]} : vector<8x8x16xf32> to vector<6x6x16xf32>
    %40 = vector.extract_strided_slice %36 {offsets = [1, 0, 0], sizes = [6, 6, 16], strides = [1, 1, 1]} : vector<8x8x16xf32> to vector<6x6x16xf32>
    %41 = vector.extract_strided_slice %36 {offsets = [1, 1, 0], sizes = [6, 6, 16], strides = [1, 1, 1]} : vector<8x8x16xf32> to vector<6x6x16xf32>
    %42 = vector.extract_strided_slice %36 {offsets = [1, 2, 0], sizes = [6, 6, 16], strides = [1, 1, 1]} : vector<8x8x16xf32> to vector<6x6x16xf32>
    %43 = vector.extract_strided_slice %36 {offsets = [2, 0, 0], sizes = [6, 6, 16], strides = [1, 1, 1]} : vector<8x8x16xf32> to vector<6x6x16xf32>
    %44 = vector.extract_strided_slice %36 {offsets = [2, 1, 0], sizes = [6, 6, 16], strides = [1, 1, 1]} : vector<8x8x16xf32> to vector<6x6x16xf32>
    %45 = vector.extract_strided_slice %36 {offsets = [2, 2, 0], sizes = [6, 6, 16], strides = [1, 1, 1]} : vector<8x8x16xf32> to vector<6x6x16xf32>
    %46 = tpu.concatenate %37, %38, %39, %40, %41, %42, %43, %44, %45 in 2 : vector<6x6x16xf32>, vector<6x6x16xf32>, vector<6x6x16xf32>, vector<6x6x16xf32>, vector<6x6x16xf32>, vector<6x6x16xf32>, vector<6x6x16xf32>, vector<6x6x16xf32>, vector<6x6x16xf32> -> vector<6x6x144xf32>
    %47 = arith.truncf %46 : vector<6x6x144xf32> to vector<6x6x144xbf16>
    %c0_10 = arith.constant 0 : index
    %c0_11 = arith.constant 0 : index
    %48 = vector.load %arg5[%c0_10, %c0_11] : memref<144x16xbf16, #tpu.memory_space<vmem>>, vector<144x16xbf16>
    "tpu.trace_start"() <{level = 10 : i32, message = "hwk,kc->hwc"}> : () -> ()
    %cst_12 = arith.constant dense<0.000000e+00> : vector<6x6x16xf32>
    %49 = tpu.matmul %47, %48, %cst_12 {dimension_numbers = #tpu.dot_dimension_numbers<[2], [0], [0, 1], [1], [0, 0, 0, 1, 1, 1], [], []>} : vector<6x6x144xbf16>, vector<144x16xbf16>, vector<6x6x16xf32> -> vector<6x6x16xf32>
    "tpu.trace_stop"() : () -> ()
    %c0_13 = arith.constant 0 : index
    %c0_14 = arith.constant 0 : index
    %50 = vector.load %arg6[%c0_13, %c0_14] : memref<1x16xf32, #tpu.memory_space<vmem>>, vector<1x16xf32>
    %51 = vector.shape_cast %50 : vector<1x16xf32> to vector<1x1x16xf32>
    %52 = vector.broadcast %51 : vector<1x1x16xf32> to vector<6x6x16xf32>
    %53 = arith.mulf %49, %52 : vector<6x6x16xf32>
    %c0_15 = arith.constant 0 : index
    %c0_16 = arith.constant 0 : index
    %54 = vector.load %arg7[%c0_15, %c0_16] : memref<1x16xf32, #tpu.memory_space<vmem>>, vector<1x16xf32>
    %55 = vector.shape_cast %54 : vector<1x16xf32> to vector<1x1x16xf32>
    %56 = vector.broadcast %55 : vector<1x1x16xf32> to vector<6x6x16xf32>
    %57 = arith.addf %53, %56 : vector<6x6x16xf32>
    %cst_17 = arith.constant 0.000000e+00 : f32
    %58 = vector.broadcast %cst_17 : f32 to vector<6x6x16xf32>
    %59 = arith.maximumf %57, %58 : vector<6x6x16xf32>
    %c0_18 = arith.constant 0 : index
    %c0_19 = arith.constant 0 : index
    %c0_20 = arith.constant 0 : index
    %c0_21 = arith.constant 0 : index
    %60 = vector.load %arg8[%c0_18, %c0_19, %c0_20, %c0_21] : memref<1x6x6x16xf32, #tpu.memory_space<vmem>>, vector<1x6x6x16xf32>
    %61 = vector.shape_cast %60 : vector<1x6x6x16xf32> to vector<6x6x16xf32>
    %62 = vector.shape_cast %59 : vector<6x6x16xf32> to vector<1x6x6x16xf32>
    tpu.vector_store %arg8[%c0_18, %c0_19, %c0_20, %c0_21], %62 {strides = array<i32>} : memref<1x6x6x16xf32, #tpu.memory_space<vmem>>, vector<1x6x6x16xf32>,
    return
  }
  func.func @transform_0(%arg0: i32) -> (i32, i32, i32, i32) {
    %c0_i32 = arith.constant 0 : i32
    %c0_i32_0 = arith.constant 0 : i32
    %c0_i32_1 = arith.constant 0 : i32
    %c0_i32_2 = arith.constant 0 : i32
    return %arg0, %c0_i32, %c0_i32_0, %c0_i32_1 : i32, i32, i32, i32
  }
  func.func @transform_1(%arg0: i32) -> (i32, i32) {
    %c0_i32 = arith.constant 0 : i32
    %c0_i32_0 = arith.constant 0 : i32
    %c0_i32_1 = arith.constant 0 : i32
    return %c0_i32, %c0_i32_0 : i32, i32
  }
  func.func @transform_2(%arg0: i32) -> (i32, i32) {
    %c0_i32 = arith.constant 0 : i32
    %c0_i32_0 = arith.constant 0 : i32
    %c0_i32_1 = arith.constant 0 : i32
    return %c0_i32, %c0_i32_0 : i32, i32
  }
  func.func @transform_3(%arg0: i32) -> (i32, i32) {
    %c0_i32 = arith.constant 0 : i32
    %c0_i32_0 = arith.constant 0 : i32
    %c0_i32_1 = arith.constant 0 : i32
    return %c0_i32, %c0_i32_0 : i32, i32
  }
  func.func @transform_4(%arg0: i32) -> (i32, i32) {
    %c0_i32 = arith.constant 0 : i32
    %c0_i32_0 = arith.constant 0 : i32
    %c0_i32_1 = arith.constant 0 : i32
    return %c0_i32, %c0_i32_0 : i32, i32
  }
  func.func @transform_5(%arg0: i32) -> (i32, i32) {
    %c0_i32 = arith.constant 0 : i32
    %c0_i32_0 = arith.constant 0 : i32
    %c0_i32_1 = arith.constant 0 : i32
    return %c0_i32, %c0_i32_0 : i32, i32
  }
  func.func @transform_6(%arg0: i32) -> (i32, i32) {
    %c0_i32 = arith.constant 0 : i32
    %c0_i32_0 = arith.constant 0 : i32
    %c0_i32_1 = arith.constant 0 : i32
    return %c0_i32, %c0_i32_0 : i32, i32
  }
  func.func @transform_7(%arg0: i32) -> (i32, i32, i32, i32) {
    %c0_i32 = arith.constant 0 : i32
    %c0_i32_0 = arith.constant 0 : i32
    %c0_i32_1 = arith.constant 0 : i32
    %c0_i32_2 = arith.constant 0 : i32
    return %arg0, %c0_i32, %c0_i32_0, %c0_i32_1 : i32, i32, i32, i32
  }
}

</mosaic_0001>

<llo_original>
// kernel: tpu_custom_call.1
$region0: #{tpu_custom_call.1}
  #allocation0 [shape = 'u32[]', space=smem, size = 0x4, offset = 0x4, fixed_abs, tag = 'smem constant byte address 0x4 - core index']
  #allocation1 [shape = 'u32[72,128]{1,0:T(1,128)}', space=vmem, size = 0x9000, scoped, tag = 'internal scratch']
  %s0 = inlined_call_operand.vmem [shape: f32[2,20,20,8], index: 0, kind: input, shape index: {}]
  %s1 = inlined_call_operand.vmem [shape: bf16[72,16], index: 1, kind: input, shape index: {}]
  %s2 = inlined_call_operand.vmem [shape: f32[1,16], index: 2, kind: input, shape index: {}]
  %s3 = inlined_call_operand.vmem [shape: f32[1,16], index: 3, kind: input, shape index: {}]
  %s4 = inlined_call_operand.vmem [shape: bf16[144,16], index: 4, kind: input, shape index: {}]
  %s5 = inlined_call_operand.vmem [shape: f32[1,16], index: 5, kind: input, shape index: {}]
  %s6 = inlined_call_operand.vmem [shape: f32[1,16], index: 6, kind: input, shape index: {}]
  %s7 = inlined_call_operand.vmem [shape: f32[2,6,6,16], index: 7, kind: output, shape index: {}]
  %s8 = sld [smem:[#allocation0]]
  $region61: #{tpu_custom_call.1} parent=0
    _
  %s10 = ssub.s32 1, %s8
  %s11 = scalar_select 0, %s10, %s8
  loop: start=0, step=1, limit=4
  $region2: #{tpu_custom_call.1} parent=0 // loop_pre_header
    _
  $region3: #{tpu_custom_call.1} parent=0 // loop_header
    %s13 = sphi 0, %s17
    %p14 = scmp.ge.s32.totalorder %s13, 4
    %s23 = sphi 0, %s25
    %s26 = sphi 0, %s23
    %s27 = sphi 0, %s26
    %s43 = sphi 0, %s27
    %s47 = sphi 0, %s47
    %s49 = sphi 0, %s47
    %s50 = sphi 0, %s49
    %s64 = sphi 0, %s50
    %s68 = sphi 0, %s68
    %s70 = sphi 0, %s68
    %s71 = sphi 0, %s70
    %s85 = sphi 0, %s71
    %s89 = sphi 0, %s89
    %s91 = sphi 0, %s89
    %s92 = sphi 0, %s91
    %s106 = sphi 0, %s92
    %s110 = sphi 0, %s110
    %s112 = sphi 0, %s110
    %s113 = sphi 0, %s112
    %s127 = sphi 0, %s113
    %s131 = sphi 0, %s131
    %s133 = sphi 0, %s131
    %s134 = sphi 0, %s133
    %s148 = sphi 0, %s134
    %s152 = sphi 0, %s152
    %s154 = sphi 0, %s152
    %s155 = sphi 0, %s154
    %s169 = sphi 0, %s155
    %s175 = sphi 0, %s177
    %s178 = sphi 0, %s175
    %s179 = sphi 0, %s178
    %s195 = sphi 0, %s179
  $region4: #{tpu_custom_call.1} parent=0 // loop_header_branch
    %16 = sbr.rel (%p14) target = $region8
  $region5: #{tpu_custom_call.1} parent=0 // loop_body
    %s18 = ssub.s32 %s13, 1
    %s19 = ssub.s32 %s13, 2
    %s20 = sadd.s32 %s13, 1
    %s21 = ssub.s32 %s13, %s20
    %p22 = scmp.eq.s32.totalorder %s21, 0
    %s24 = sadd.s32 %s23, 1
    %s25 = scalar_select %p22, %s23, %s24
    %p28 = pneg %p22
    %p29 = scmp.eq.s32.totalorder %s13, 1
    %p30 = por %p28, %p29
    %p31 = scmp.ne.s32.totalorder %s23, %s26
    %p32 = scmp.eq.s32.totalorder %s13, 0
    %p33 = por %p31, %p32
    %p34 = scmp.ne.s32.totalorder %s23, %s26
    %p35 = scmp.eq.s32.totalorder %s18, 1
    %p36 = por %p34, %p35
    %p37 = scmp.ne.s32.totalorder %s26, %s27
    %p38 = scmp.eq.s32.totalorder %s18, 0
    %p39 = por %p37, %p38
    %p40 = scmp.ne.s32.totalorder %s26, %s27
    %p41 = scmp.eq.s32.totalorder %s19, 1
    %p42 = por %p40, %p41
    %p44 = scmp.ne.s32.totalorder %s27, %s43
    %p45 = scmp.eq.s32.totalorder %s19, 0
    %p46 = por %p44, %p45
    %s48 = sadd.s32 %s47, 1
    %p51 = scmp.eq.s32.totalorder %s13, 1
    %p52 = scmp.ne.s32.totalorder %s47, %s49
    %p53 = scmp.eq.s32.totalorder %s13, 0
    %p54 = por %p52, %p53
    %p55 = scmp.ne.s32.totalorder %s47, %s49
    %p56 = scmp.eq.s32.totalorder %s18, 1
    %p57 = por %p55, %p56
    %p58 = scmp.ne.s32.totalorder %s49, %s50
    %p59 = scmp.eq.s32.totalorder %s18, 0
    %p60 = por %p58, %p59
    %p61 = scmp.ne.s32.totalorder %s49, %s50
    %p62 = scmp.eq.s32.totalorder %s19, 1
    %p63 = por %p61, %p62
    %p65 = scmp.ne.s32.totalorder %s50, %s64
    %p66 = scmp.eq.s32.totalorder %s19, 0
    %p67 = por %p65, %p66
    %s69 = sadd.s32 %s68, 1
    %p72 = scmp.eq.s32.totalorder %s13, 1
    %p73 = scmp.ne.s32.totalorder %s68, %s70
    %p74 = scmp.eq.s32.totalorder %s13, 0
    %p75 = por %p73, %p74
    %p76 = scmp.ne.s32.totalorder %s68, %s70
    %p77 = scmp.eq.s32.totalorder %s18, 1
    %p78 = por %p76, %p77
    %p79 = scmp.ne.s32.totalorder %s70, %s71
    %p80 = scmp.eq.s32.totalorder %s18, 0
    %p81 = por %p79, %p80
    %p82 = scmp.ne.s32.totalorder %s70, %s71
    %p83 = scmp.eq.s32.totalorder %s19, 1
    %p84 = por %p82, %p83
    %p86 = scmp.ne.s32.totalorder %s71, %s85
    %p87 = scmp.eq.s32.totalorder %s19, 0
    %p88 = por %p86, %p87
    %s90 = sadd.s32 %s89, 1
    %p93 = scmp.eq.s32.totalorder %s13, 1
    %p94 = scmp.ne.s32.totalorder %s89, %s91
    %p95 = scmp.eq.s32.totalorder %s13, 0
    %p96 = por %p94, %p95
    %p97 = scmp.ne.s32.totalorder %s89, %s91
    %p98 = scmp.eq.s32.totalorder %s18, 1
    %p99 = por %p97, %p98
    %p100 = scmp.ne.s32.totalorder %s91, %s92
    %p101 = scmp.eq.s32.totalorder %s18, 0
    %p102 = por %p100, %p101
    %p103 = scmp.ne.s32.totalorder %s91, %s92
    %p104 = scmp.eq.s32.totalorder %s19, 1
    %p105 = por %p103, %p104
    %p107 = scmp.ne.s32.totalorder %s92, %s106
    %p108 = scmp.eq.s32.totalorder %s19, 0
    %p109 = por %p107, %p108
    %s111 = sadd.s32 %s110, 1
    %p114 = scmp.eq.s32.totalorder %s13, 1
    %p115 = scmp.ne.s32.totalorder %s110, %s112
    %p116 = scmp.eq.s32.totalorder %s13, 0
    %p117 = por %p115, %p116
    %p118 = scmp.ne.s32.totalorder %s110, %s112
    %p119 = scmp.eq.s32.totalorder %s18, 1
    %p120 = por %p118, %p119
    %p121 = scmp.ne.s32.totalorder %s112, %s113
    %p122 = scmp.eq.s32.totalorder %s18, 0
    %p123 = por %p121, %p122
    %p124 = scmp.ne.s32.totalorder %s112, %s113
    %p125 = scmp.eq.s32.totalorder %s19, 1
    %p126 = por %p124, %p125
    %p128 = scmp.ne.s32.totalorder %s113, %s127
    %p129 = scmp.eq.s32.totalorder %s19, 0
    %p130 = por %p128, %p129
    %s132 = sadd.s32 %s131, 1
    %p135 = scmp.eq.s32.totalorder %s13, 1
    %p136 = scmp.ne.s32.totalorder %s131, %s133
    %p137 = scmp.eq.s32.totalorder %s13, 0
    %p138 = por %p136, %p137
    %p139 = scmp.ne.s32.totalorder %s131, %s133
    %p140 = scmp.eq.s32.totalorder %s18, 1
    %p141 = por %p139, %p140
    %p142 = scmp.ne.s32.totalorder %s133, %s134
    %p143 = scmp.eq.s32.totalorder %s18, 0
    %p144 = por %p142, %p143
    %p145 = scmp.ne.s32.totalorder %s133, %s134
    %p146 = scmp.eq.s32.totalorder %s19, 1
    %p147 = por %p145, %p146
    %p149 = scmp.ne.s32.totalorder %s134, %s148
    %p150 = scmp.eq.s32.totalorder %s19, 0
    %p151 = por %p149, %p150
    %s153 = sadd.s32 %s152, 1
    %p156 = scmp.eq.s32.totalorder %s13, 1
    %p157 = scmp.ne.s32.totalorder %s152, %s154
    %p158 = scmp.eq.s32.totalorder %s13, 0
    %p159 = por %p157, %p158
    %p160 = scmp.ne.s32.totalorder %s152, %s154
    %p161 = scmp.eq.s32.totalorder %s18, 1
    %p162 = por %p160, %p161
    %p163 = scmp.ne.s32.totalorder %s154, %s155
    %p164 = scmp.eq.s32.totalorder %s18, 0
    %p165 = por %p163, %p164
    %p166 = scmp.ne.s32.totalorder %s154, %s155
    %p167 = scmp.eq.s32.totalorder %s19, 1
    %p168 = por %p166, %p167
    %p170 = scmp.ne.s32.totalorder %s155, %s169
    %p171 = scmp.eq.s32.totalorder %s19, 0
    %p172 = por %p170, %p171
    %s173 = ssub.s32 %s13, %s20
    %p174 = scmp.eq.s32.totalorder %s173, 0
    %s176 = sadd.s32 %s175, 1
    %s177 = scalar_select %p174, %s175, %s176
    %p180 = pneg %p174
    %p181 = scmp.eq.s32.totalorder %s13, 1
    %p182 = por %p180, %p181
    %p183 = scmp.ne.s32.totalorder %s175, %s178
    %p184 = scmp.eq.s32.totalorder %s13, 0
    %p185 = por %p183, %p184
    %p186 = scmp.ne.s32.totalorder %s175, %s178
    %p187 = scmp.eq.s32.totalorder %s18, 1
    %p188 = por %p186, %p187
    %p189 = scmp.ne.s32.totalorder %s178, %s179
    %p190 = scmp.eq.s32.totalorder %s18, 0
    %p191 = por %p189, %p190
    %p192 = scmp.ne.s32.totalorder %s178, %s179
    %p193 = scmp.eq.s32.totalorder %s19, 1
    %p194 = por %p192, %p193
    %p196 = scmp.ne.s32.totalorder %s179, %s195
    %p197 = scmp.eq.s32.totalorder %s19, 0
    %p198 = por %p196, %p197
    %p199 = scmp.le.s32.totalorder 1, %s13
    %p200 = scmp.lt.s32.totalorder %s13, 3
    %p201 = pnand %p199, %p200
    %p202 = pneg %p201
    // Predicated region
    $region9: #{tpu_custom_call.1} parent=5 // pred_check
      _
    $region10: #{tpu_custom_call.1} parent=5 // pred_check_branch
      %204 = sbr.rel (%p201) target = $region12
    $region11: #{tpu_custom_call.1} parent=5 // pred_region
      %s205 = ssub.s32 %s13, 1
      // Predicated region
      $region13: #{tpu_custom_call.1} parent=11 // pred_check
        %p206 = pneg %p60
      $region14: #{tpu_custom_call.1} parent=11 // pred_check_branch
        %208 = sbr.rel (%p206) target = $region16
      $region15: #{tpu_custom_call.1} parent=11 // pred_region
        _
      $region16: #{tpu_custom_call.1} parent=11 // pred_fallthru
        _
      // Predicated region
      $region17: #{tpu_custom_call.1} parent=11 // pred_check
        %p209 = pneg %p81
      $region18: #{tpu_custom_call.1} parent=11 // pred_check_branch
        %211 = sbr.rel (%p209) target = $region20
      $region19: #{tpu_custom_call.1} parent=11 // pred_region
        _
      $region20: #{tpu_custom_call.1} parent=11 // pred_fallthru
        _
      // Predicated region
      $region21: #{tpu_custom_call.1} parent=11 // pred_check
        %p212 = pneg %p102
      $region22: #{tpu_custom_call.1} parent=11 // pred_check_branch
        %214 = sbr.rel (%p212) target = $region24
      $region23: #{tpu_custom_call.1} parent=11 // pred_region
        _
      $region24: #{tpu_custom_call.1} parent=11 // pred_fallthru
        _
      // Predicated region
      $region25: #{tpu_custom_call.1} parent=11 // pred_check
        %p215 = pneg %p123
      $region26: #{tpu_custom_call.1} parent=11 // pred_check_branch
        %217 = sbr.rel (%p215) target = $region28
      $region27: #{tpu_custom_call.1} parent=11 // pred_region
        _
      $region28: #{tpu_custom_call.1} parent=11 // pred_fallthru
        _
      // Predicated region
      $region29: #{tpu_custom_call.1} parent=11 // pred_check
        %p218 = pneg %p144
      $region30: #{tpu_custom_call.1} parent=11 // pred_check_branch
        %220 = sbr.rel (%p218) target = $region32
      $region31: #{tpu_custom_call.1} parent=11 // pred_region
        _
      $region32: #{tpu_custom_call.1} parent=11 // pred_fallthru
        _
      // Predicated region
      $region33: #{tpu_custom_call.1} parent=11 // pred_check
        %p221 = pneg %p165
      $region34: #{tpu_custom_call.1} parent=11 // pred_check_branch
        %223 = sbr.rel (%p221) target = $region36
      $region35: #{tpu_custom_call.1} parent=11 // pred_region
        _
      $region36: #{tpu_custom_call.1} parent=11 // pred_fallthru
        _
    $region12: #{tpu_custom_call.1} parent=5 // pred_fallthru
      _
    %p224 = scmp.lt.s32.totalorder %s13, 2
    // Predicated region
    $region37: #{tpu_custom_call.1} parent=5 // pred_check
      %p225 = pneg %p224
    $region38: #{tpu_custom_call.1} parent=5 // pred_check_branch
      %227 = sbr.rel (%p225) target = $region40
    $region39: #{tpu_custom_call.1} parent=5 // pred_region
      // Predicated region
      $region41: #{tpu_custom_call.1} parent=39 // pred_check
        %p228 = pneg %p33
      $region42: #{tpu_custom_call.1} parent=39 // pred_check_branch
        %230 = sbr.rel (%p228) target = $region44
      $region43: #{tpu_custom_call.1} parent=39 // pred_region
        %p231 = scmp.lt.s32.totalorder %s13, 1
        %s232 = scalar_select %p231, %s13, 1
        %s233 = smul.addr %s232, 60
        %s234 = smul.addr %s233, 8
        %s235 = scalar_lea.vmem %s0, %s234
      $region44: #{tpu_custom_call.1} parent=39 // pred_fallthru
        _
    $region40: #{tpu_custom_call.1} parent=5 // pred_fallthru
      _
    %p236 = scmp.le.s32.totalorder 1, %s13
    %p237 = scmp.lt.s32.totalorder %s13, 3
    %p238 = pnand %p236, %p237
    %p239 = pneg %p238
    // Predicated region
    $region45: #{tpu_custom_call.1} parent=5 // pred_check
      _
    $region46: #{tpu_custom_call.1} parent=5 // pred_check_branch
      %241 = sbr.rel (%p238) target = $region48
    $region47: #{tpu_custom_call.1} parent=5 // pred_region
      %s242 = ssub.s32 %s13, 1
      %p243 = scmp.lt.s32.totalorder %s18, 1
      %s244 = scalar_select %p243, %s18, 1
      %s245 = smul.addr %s244, 60
      %s246 = smul.addr %s245, 8
      %s247 = scalar_lea.vmem %s0, %s246
      %p248 = pneg %p39
      %p249 = pneg %p36
      %p250 = pneg %p60
      %p251 = pneg %p57
      %p252 = pneg %p81
      %p253 = pneg %p78
      %p254 = pneg %p102
      %p255 = pneg %p99
      %p256 = pneg %p123
      %p257 = pneg %p120
      %p258 = pneg %p144
      %p259 = pneg %p141
      %p260 = pneg %p165
      %p261 = pneg %p162
      %p262 = pneg %p191
      %p263 = pneg %p188
      %p264 = scmp.lt.s32.totalorder %s18, 1
      %s265 = scalar_select %p264, %s18, 1
      %s266 = smul.addr %s265, 6
      %s267 = smul.addr %s266, 8
      %s268 = scalar_lea.vmem %s7, %s267
      %p269 = scmp.lt.s32.totalorder %s18, 1
      %s270 = scalar_select %p269, %s18, 1
      %s271 = smul.addr %s270, 60
      %s272 = smul.addr %s271, 8
      %s273 = scalar_lea.vmem %s0, %s272
      %p274 = scmp.lt.s32.totalorder %s18, 1
      %s275 = scalar_select %p274, %s18, 1
      %s276 = smul.addr %s275, 6
      %s277 = smul.addr %s276, 8
      %s278 = scalar_lea.vmem %s7, %s277
      %v280 = vld [vmem:[%s273] sm:$0xff]
      %v281 = vld [vmem:[%s273 + $0x8] sm:$0xff]
      %v282 = vld [vmem:[%s273 + $0x10] sm:$0xf]
      %v283 = vld [vmem:[%s273 + $0x18] sm:$0xff]
      %v284 = vld [vmem:[%s273 + $0x20] sm:$0xff]
      %v285 = vld [vmem:[%s273 + $0x28] sm:$0xf]
      %v286 = vld [vmem:[%s273 + $0x30] sm:$0xff]
      %v287 = vld [vmem:[%s273 + $0x38] sm:$0xff]
      %v288 = vld [vmem:[%s273 + $0x40] sm:$0xf]
      %v289 = vld [vmem:[%s273 + $0x48] sm:$0xff]
      %v290 = vld [vmem:[%s273 + $0x50] sm:$0xff]
      %v291 = vld [vmem:[%s273 + $0x58] sm:$0xf]
      %v292 = vld [vmem:[%s273 + $0x60] sm:$0xff]
      %v293 = vld [vmem:[%s273 + $0x68] sm:$0xff]
      %v294 = vld [vmem:[%s273 + $0x70] sm:$0xf]
      %v295 = vld [vmem:[%s273 + $0x78] sm:$0xff]
      %v296 = vld [vmem:[%s273 + $0x80] sm:$0xff]
      %v297 = vld [vmem:[%s273 + $0x88] sm:$0xf]
      %v298 = vld [vmem:[%s273 + $0x90] sm:$0xff]
      %v299 = vld [vmem:[%s273 + $0x98] sm:$0xff]
      %v300 = vld [vmem:[%s273 + $0xa0] sm:$0xf]
      %v301 = vld [vmem:[%s273 + $0xa8] sm:$0xff]
      %v302 = vld [vmem:[%s273 + $0xb0] sm:$0xff]
      %v303 = vld [vmem:[%s273 + $0xb8] sm:$0xf]
      %v304 = vld [vmem:[%s273 + $0xc0] sm:$0xff]
      %v305 = vld [vmem:[%s273 + $0xc8] sm:$0xff]
      %v306 = vld [vmem:[%s273 + $0xd0] sm:$0xf]
      %v307 = vld [vmem:[%s273 + $0xd8] sm:$0xff]
      %v308 = vld [vmem:[%s273 + $0xe0] sm:$0xff]
      %v309 = vld [vmem:[%s273 + $0xe8] sm:$0xf]
      %v310 = vld [vmem:[%s273 + $0xf0] sm:$0xff]
      %v311 = vld [vmem:[%s273 + $0xf8] sm:$0xff]
      %v312 = vld [vmem:[%s273 + $0x100] sm:$0xf]
      %v313 = vld [vmem:[%s273 + $0x108] sm:$0xff]
      %v314 = vld [vmem:[%s273 + $0x110] sm:$0xff]
      %v315 = vld [vmem:[%s273 + $0x118] sm:$0xf]
      %v316 = vld [vmem:[%s273 + $0x120] sm:$0xff]
      %v317 = vld [vmem:[%s273 + $0x128] sm:$0xff]
      %v318 = vld [vmem:[%s273 + $0x130] sm:$0xf]
      %v319 = vld [vmem:[%s273 + $0x138] sm:$0xff]
      %v320 = vld [vmem:[%s273 + $0x140] sm:$0xff]
      %v321 = vld [vmem:[%s273 + $0x148] sm:$0xf]
      %v322 = vld [vmem:[%s273 + $0x150] sm:$0xff]
      %v323 = vld [vmem:[%s273 + $0x158] sm:$0xff]
      %v324 = vld [vmem:[%s273 + $0x160] sm:$0xf]
      %v325 = vld [vmem:[%s273 + $0x168] sm:$0xff]
      %v326 = vld [vmem:[%s273 + $0x170] sm:$0xff]
      %v327 = vld [vmem:[%s273 + $0x178] sm:$0xf]
      %v328 = vld [vmem:[%s273 + $0x180] sm:$0xff]
      %v329 = vld [vmem:[%s273 + $0x188] sm:$0xff]
      %v330 = vld [vmem:[%s273 + $0x190] sm:$0xf]
      %v331 = vld [vmem:[%s273 + $0x198] sm:$0xff]
      %v332 = vld [vmem:[%s273 + $0x1a0] sm:$0xff]
      %v333 = vld [vmem:[%s273 + $0x1a8] sm:$0xf]
      %v334 = vld [vmem:[%s273 + $0x1b0] sm:$0xff]
      %v335 = vld [vmem:[%s273 + $0x1b8] sm:$0xff]
      %v336 = vld [vmem:[%s273 + $0x1c0] sm:$0xf]
      %v337 = vld [vmem:[%s273 + $0x1c8] sm:$0xff]
      %v338 = vld [vmem:[%s273 + $0x1d0] sm:$0xff]
      %v339 = vld [vmem:[%s273 + $0x1d8] sm:$0xf]
      %v400 = vrot.slane %v280, 2
      %v401 = vrot.slane %v280, 4
      %v402 = vrot.slane %v280, 6
      %v403 = vrot.slane %v281, 2
      %v404 = vrot.slane %v281, 4
      %v405 = vrot.slane %v281, 6
      %v406 = vrot.slane %v282, 2
      %v407 = vrot.slane %v283, 2
      %v408 = vrot.slane %v283, 4
      %v409 = vrot.slane %v283, 6
      %v410 = vrot.slane %v284, 2
      %v411 = vrot.slane %v284, 4
      %v412 = vrot.slane %v284, 6
      %v413 = vrot.slane %v285, 2
      %v414 = vrot.slane %v286, 2
      %v415 = vrot.slane %v286, 4
      %v416 = vrot.slane %v286, 6
      %v417 = vrot.slane %v287, 2
      %v418 = vrot.slane %v287, 4
      %v419 = vrot.slane %v287, 6
      %v420 = vrot.slane %v288, 2
      %v421 = vrot.slane %v289, 2
      %v422 = vrot.slane %v289, 4
      %v423 = vrot.slane %v289, 6
      %v424 = vrot.slane %v290, 2
      %v425 = vrot.slane %v290, 4
      %v426 = vrot.slane %v290, 6
      %v427 = vrot.slane %v291, 2
      %v428 = vrot.slane %v292, 2
      %v429 = vrot.slane %v292, 4
      %v430 = vrot.slane %v292, 6
      %v431 = vrot.slane %v293, 2
      %v432 = vrot.slane %v293, 4
      %v433 = vrot.slane %v293, 6
      %v434 = vrot.slane %v294, 2
      %v435 = vrot.slane %v295, 2
      %v436 = vrot.slane %v295, 4
      %v437 = vrot.slane %v295, 6
      %v438 = vrot.slane %v296, 2
      %v439 = vrot.slane %v296, 4
      %v440 = vrot.slane %v296, 6
      %v441 = vrot.slane %v297, 2
      %v442 = vrot.slane %v298, 2
      %v443 = vrot.slane %v298, 4
      %v444 = vrot.slane %v298, 6
      %v445 = vrot.slane %v299, 2
      %v446 = vrot.slane %v299, 4
      %v447 = vrot.slane %v299, 6
      %v448 = vrot.slane %v300, 2
      %v449 = vrot.slane %v301, 2
      %v450 = vrot.slane %v301, 4
      %v451 = vrot.slane %v301, 6
      %v452 = vrot.slane %v302, 2
      %v453 = vrot.slane %v302, 4
      %v454 = vrot.slane %v302, 6
      %v455 = vrot.slane %v303, 2
      %v456 = vrot.slane %v304, 2
      %v457 = vrot.slane %v304, 4
      %v458 = vrot.slane %v304, 6
      %v459 = vrot.slane %v305, 2
      %v460 = vrot.slane %v305, 4
      %v461 = vrot.slane %v305, 6
      %v462 = vrot.slane %v306, 2
      %v463 = vrot.slane %v307, 2
      %v464 = vrot.slane %v307, 4
      %v465 = vrot.slane %v307, 6
      %v466 = vrot.slane %v308, 2
      %v467 = vrot.slane %v308, 4
      %v468 = vrot.slane %v308, 6
      %v469 = vrot.slane %v309, 2
      %v470 = vrot.slane %v310, 2
      %v471 = vrot.slane %v310, 4
      %v472 = vrot.slane %v310, 6
      %v473 = vrot.slane %v311, 2
      %v474 = vrot.slane %v311, 4
      %v475 = vrot.slane %v311, 6
      %v476 = vrot.slane %v312, 2
      %v477 = vrot.slane %v313, 2
      %v478 = vrot.slane %v313, 4
      %v479 = vrot.slane %v313, 6
      %v480 = vrot.slane %v314, 2
      %v481 = vrot.slane %v314, 4
      %v482 = vrot.slane %v314, 6
      %v483 = vrot.slane %v315, 2
      %v484 = vrot.slane %v316, 2
      %v485 = vrot.slane %v316, 4
      %v486 = vrot.slane %v316, 6
      %v487 = vrot.slane %v317, 2
      %v488 = vrot.slane %v317, 4
      %v489 = vrot.slane %v317, 6
      %v490 = vrot.slane %v318, 2
      %v491 = vrot.slane %v319, 2
      %v492 = vrot.slane %v319, 4
      %v493 = vrot.slane %v319, 6
      %v494 = vrot.slane %v320, 2
      %v495 = vrot.slane %v320, 4
      %v496 = vrot.slane %v320, 6
      %v497 = vrot.slane %v321, 2
      %v498 = vrot.slane %v322, 2
      %v499 = vrot.slane %v322, 4
      %v500 = vrot.slane %v322, 6
      %v501 = vrot.slane %v323, 2
      %v502 = vrot.slane %v323, 4
      %v503 = vrot.slane %v323, 6
      %v504 = vrot.slane %v324, 2
      %v505 = vrot.slane %v325, 2
      %v506 = vrot.slane %v325, 4
      %v507 = vrot.slane %v325, 6
      %v508 = vrot.slane %v326, 2
      %v509 = vrot.slane %v326, 4
      %v510 = vrot.slane %v326, 6
      %v511 = vrot.slane %v327, 2
      %v512 = vrot.slane %v328, 2
      %v513 = vrot.slane %v328, 4
      %v514 = vrot.slane %v328, 6
      %v515 = vrot.slane %v329, 2
      %v516 = vrot.slane %v329, 4
      %v517 = vrot.slane %v329, 6
      %v518 = vrot.slane %v330, 2
      %v519 = vrot.slane %v331, 2
      %v520 = vrot.slane %v331, 4
      %v521 = vrot.slane %v331, 6
      %v522 = vrot.slane %v332, 2
      %v523 = vrot.slane %v332, 4
      %v524 = vrot.slane %v332, 6
      %v525 = vrot.slane %v333, 2
      %v526 = vrot.slane %v334, 2
      %v527 = vrot.slane %v334, 4
      %v528 = vrot.slane %v334, 6
      %v529 = vrot.slane %v335, 2
      %v530 = vrot.slane %v335, 4
      %v531 = vrot.slane %v335, 6
      %v532 = vrot.slane %v336, 2
      %v533 = vrot.slane %v337, 2
      %v534 = vrot.slane %v337, 4
      %v535 = vrot.slane %v337, 6
      %v536 = vrot.slane %v338, 2
      %v537 = vrot.slane %v338, 4
      %v538 = vrot.slane %v338, 6
      %v539 = vrot.slane %v339, 2
      %v680 = vrot.slane %v280, 7
      %v681 = vrot.slane %v680, 2
      %v682 = vrot.slane %v400, 7
      %v683 = vrot.slane %v682, 2
      %v684 = vrot.slane %v401, 7
      %v685 = vrot.slane %v684, 2
      %v686 = vrot.slane %v402, 7
      %v687 = vrot.slane %v686, 2
      %v688 = vrot.slane %v281, 7
      %v689 = vrot.slane %v688, 2
      %v690 = vrot.slane %v403, 7
      %v691 = vrot.slane %v690, 2
      %v692 = vrot.slane %v404, 7
      %v693 = vrot.slane %v692, 2
      %v694 = vrot.slane %v405, 7
      %v695 = vrot.slane %v694, 2
      %v696 = vrot.slane %v282, 7
      %v697 = vrot.slane %v696, 2
      %v698 = vrot.slane %v406, 7
      %v699 = vrot.slane %v698, 2
      %v700 = vrot.slane %v283, 7
      %v701 = vrot.slane %v700, 2
      %v702 = vrot.slane %v407, 7
      %v703 = vrot.slane %v702, 2
      %v704 = vrot.slane %v408, 7
      %v705 = vrot.slane %v704, 2
      %v706 = vrot.slane %v409, 7
      %v707 = vrot.slane %v706, 2
      %v708 = vrot.slane %v284, 7
      %v709 = vrot.slane %v708, 2
      %v710 = vrot.slane %v410, 7
      %v711 = vrot.slane %v710, 2
      %v712 = vrot.slane %v411, 7
      %v713 = vrot.slane %v712, 2
      %v714 = vrot.slane %v412, 7
      %v715 = vrot.slane %v714, 2
      %v716 = vrot.slane %v285, 7
      %v717 = vrot.slane %v716, 2
      %v718 = vrot.slane %v413, 7
      %v719 = vrot.slane %v718, 2
      %v720 = vrot.slane %v286, 7
      %v721 = vrot.slane %v720, 2
      %v722 = vrot.slane %v414, 7
      %v723 = vrot.slane %v722, 2
      %v724 = vrot.slane %v415, 7
      %v725 = vrot.slane %v724, 2
      %v726 = vrot.slane %v416, 7
      %v727 = vrot.slane %v726, 2
      %v728 = vrot.slane %v287, 7
      %v729 = vrot.slane %v728, 2
      %v730 = vrot.slane %v417, 7
      %v731 = vrot.slane %v730, 2
      %v732 = vrot.slane %v418, 7
      %v733 = vrot.slane %v732, 2
      %v734 = vrot.slane %v419, 7
      %v735 = vrot.slane %v734, 2
      %v736 = vrot.slane %v288, 7
      %v737 = vrot.slane %v736, 2
      %v738 = vrot.slane %v420, 7
      %v739 = vrot.slane %v738, 2
      %v740 = vrot.slane %v289, 7
      %v741 = vrot.slane %v740, 2
      %v742 = vrot.slane %v421, 7
      %v743 = vrot.slane %v742, 2
      %v744 = vrot.slane %v422, 7
      %v745 = vrot.slane %v744, 2
      %v746 = vrot.slane %v423, 7
      %v747 = vrot.slane %v746, 2
      %v748 = vrot.slane %v290, 7
      %v749 = vrot.slane %v748, 2
      %v750 = vrot.slane %v424, 7
      %v751 = vrot.slane %v750, 2
      %v752 = vrot.slane %v425, 7
      %v753 = vrot.slane %v752, 2
      %v754 = vrot.slane %v426, 7
      %v755 = vrot.slane %v754, 2
      %v756 = vrot.slane %v291, 7
      %v757 = vrot.slane %v756, 2
      %v758 = vrot.slane %v427, 7
      %v759 = vrot.slane %v758, 2
      %v760 = vrot.slane %v292, 7
      %v761 = vrot.slane %v760, 2
      %v762 = vrot.slane %v428, 7
      %v763 = vrot.slane %v762, 2
      %v764 = vrot.slane %v429, 7
      %v765 = vrot.slane %v764, 2
      %v766 = vrot.slane %v430, 7
      %v767 = vrot.slane %v766, 2
      %v768 = vrot.slane %v293, 7
      %v769 = vrot.slane %v768, 2
      %v770 = vrot.slane %v431, 7
      %v771 = vrot.slane %v770, 2
      %v772 = vrot.slane %v432, 7
      %v773 = vrot.slane %v772, 2
      %v774 = vrot.slane %v433, 7
      %v775 = vrot.slane %v774, 2
      %v776 = vrot.slane %v294, 7
      %v777 = vrot.slane %v776, 2
      %v778 = vrot.slane %v434, 7
      %v779 = vrot.slane %v778, 2
      %v780 = vrot.slane %v295, 7
      %v781 = vrot.slane %v780, 2
      %v782 = vrot.slane %v435, 7
      %v783 = vrot.slane %v782, 2
      %v784 = vrot.slane %v436, 7
      %v785 = vrot.slane %v784, 2
      %v786 = vrot.slane %v437, 7
      %v787 = vrot.slane %v786, 2
      %v788 = vrot.slane %v296, 7
      %v789 = vrot.slane %v788, 2
      %v790 = vrot.slane %v438, 7
      %v791 = vrot.slane %v790, 2
      %v792 = vrot.slane %v439, 7
      %v793 = vrot.slane %v792, 2
      %v794 = vrot.slane %v440, 7
      %v795 = vrot.slane %v794, 2
      %v796 = vrot.slane %v297, 7
      %v797 = vrot.slane %v796, 2
      %v798 = vrot.slane %v441, 7
      %v799 = vrot.slane %v798, 2
      %v800 = vrot.slane %v298, 7
      %v801 = vrot.slane %v800, 2
      %v802 = vrot.slane %v442, 7
      %v803 = vrot.slane %v802, 2
      %v804 = vrot.slane %v443, 7
      %v805 = vrot.slane %v804, 2
      %v806 = vrot.slane %v444, 7
      %v807 = vrot.slane %v806, 2
      %v808 = vrot.slane %v299, 7
      %v809 = vrot.slane %v808, 2
      %v810 = vrot.slane %v445, 7
      %v811 = vrot.slane %v810, 2
      %v812 = vrot.slane %v446, 7
      %v813 = vrot.slane %v812, 2
      %v814 = vrot.slane %v447, 7
      %v815 = vrot.slane %v814, 2
      %v816 = vrot.slane %v300, 7
      %v817 = vrot.slane %v816, 2
      %v818 = vrot.slane %v448, 7
      %v819 = vrot.slane %v818, 2
      %v820 = vrot.slane %v301, 7
      %v821 = vrot.slane %v820, 2
      %v822 = vrot.slane %v449, 7
      %v823 = vrot.slane %v822, 2
      %v824 = vrot.slane %v450, 7
      %v825 = vrot.slane %v824, 2
      %v826 = vrot.slane %v451, 7
      %v827 = vrot.slane %v826, 2
      %v828 = vrot.slane %v302, 7
      %v829 = vrot.slane %v828, 2
      %v830 = vrot.slane %v452, 7
      %v831 = vrot.slane %v830, 2
      %v832 = vrot.slane %v453, 7
      %v833 = vrot.slane %v832, 2
      %v834 = vrot.slane %v454, 7
      %v835 = vrot.slane %v834, 2
      %v836 = vrot.slane %v303, 7
      %v837 = vrot.slane %v836, 2
      %v838 = vrot.slane %v455, 7
      %v839 = vrot.slane %v838, 2
      %v840 = vrot.slane %v304, 7
      %v841 = vrot.slane %v840, 2
      %v842 = vrot.slane %v456, 7
      %v843 = vrot.slane %v842, 2
      %v844 = vrot.slane %v457, 7
      %v845 = vrot.slane %v844, 2
      %v846 = vrot.slane %v458, 7
      %v847 = vrot.slane %v846, 2
      %v848 = vrot.slane %v305, 7
      %v849 = vrot.slane %v848, 2
      %v850 = vrot.slane %v459, 7
      %v851 = vrot.slane %v850, 2
      %v852 = vrot.slane %v460, 7
      %v853 = vrot.slane %v852, 2
      %v854 = vrot.slane %v461, 7
      %v855 = vrot.slane %v854, 2
      %v856 = vrot.slane %v306, 7
      %v857 = vrot.slane %v856, 2
      %v858 = vrot.slane %v462, 7
      %v859 = vrot.slane %v858, 2
      %v860 = vrot.slane %v307, 7
      %v861 = vrot.slane %v860, 2
      %v862 = vrot.slane %v463, 7
      %v863 = vrot.slane %v862, 2
      %v864 = vrot.slane %v464, 7
      %v865 = vrot.slane %v864, 2
      %v866 = vrot.slane %v465, 7
      %v867 = vrot.slane %v866, 2
      %v868 = vrot.slane %v308, 7
      %v869 = vrot.slane %v868, 2
      %v870 = vrot.slane %v466, 7
      %v871 = vrot.slane %v870, 2
      %v872 = vrot.slane %v467, 7
      %v873 = vrot.slane %v872, 2
      %v874 = vrot.slane %v468, 7
      %v875 = vrot.slane %v874, 2
      %v876 = vrot.slane %v309, 7
      %v877 = vrot.slane %v876, 2
      %v878 = vrot.slane %v469, 7
      %v879 = vrot.slane %v878, 2
      %v880 = vrot.slane %v310, 7
      %v881 = vrot.slane %v880, 2
      %v882 = vrot.slane %v470, 7
      %v883 = vrot.slane %v882, 2
      %v884 = vrot.slane %v471, 7
      %v885 = vrot.slane %v884, 2
      %v886 = vrot.slane %v472, 7
      %v887 = vrot.slane %v886, 2
      %v888 = vrot.slane %v311, 7
      %v889 = vrot.slane %v888, 2
      %v890 = vrot.slane %v473, 7
      %v891 = vrot.slane %v890, 2
      %v892 = vrot.slane %v474, 7
      %v893 = vrot.slane %v892, 2
      %v894 = vrot.slane %v475, 7
      %v895 = vrot.slane %v894, 2
      %v896 = vrot.slane %v312, 7
      %v897 = vrot.slane %v896, 2
      %v898 = vrot.slane %v476, 7
      %v899 = vrot.slane %v898, 2
      %v900 = vrot.slane %v313, 7
      %v901 = vrot.slane %v900, 2
      %v902 = vrot.slane %v477, 7
      %v903 = vrot.slane %v902, 2
      %v904 = vrot.slane %v478, 7
      %v905 = vrot.slane %v904, 2
      %v906 = vrot.slane %v479, 7
      %v907 = vrot.slane %v906, 2
      %v908 = vrot.slane %v314, 7
      %v909 = vrot.slane %v908, 2
      %v910 = vrot.slane %v480, 7
      %v911 = vrot.slane %v910, 2
      %v912 = vrot.slane %v481, 7
      %v913 = vrot.slane %v912, 2
      %v914 = vrot.slane %v482, 7
      %v915 = vrot.slane %v914, 2
      %v916 = vrot.slane %v315, 7
      %v917 = vrot.slane %v916, 2
      %v918 = vrot.slane %v483, 7
      %v919 = vrot.slane %v918, 2
      %v920 = vrot.slane %v316, 7
      %v921 = vrot.slane %v920, 2
      %v922 = vrot.slane %v484, 7
      %v923 = vrot.slane %v922, 2
      %v924 = vrot.slane %v485, 7
      %v925 = vrot.slane %v924, 2
      %v926 = vrot.slane %v486, 7
      %v927 = vrot.slane %v926, 2
      %v928 = vrot.slane %v317, 7
      %v929 = vrot.slane %v928, 2
      %v930 = vrot.slane %v487, 7
      %v931 = vrot.slane %v930, 2
      %v932 = vrot.slane %v488, 7
      %v933 = vrot.slane %v932, 2
      %v934 = vrot.slane %v489, 7
      %v935 = vrot.slane %v934, 2
      %v936 = vrot.slane %v318, 7
      %v937 = vrot.slane %v936, 2
      %v938 = vrot.slane %v490, 7
      %v939 = vrot.slane %v938, 2
      %v940 = vrot.slane %v319, 7
      %v941 = vrot.slane %v940, 2
      %v942 = vrot.slane %v491, 7
      %v943 = vrot.slane %v942, 2
      %v944 = vrot.slane %v492, 7
      %v945 = vrot.slane %v944, 2
      %v946 = vrot.slane %v493, 7
      %v947 = vrot.slane %v946, 2
      %v948 = vrot.slane %v320, 7
      %v949 = vrot.slane %v948, 2
      %v950 = vrot.slane %v494, 7
      %v951 = vrot.slane %v950, 2
      %v952 = vrot.slane %v495, 7
      %v953 = vrot.slane %v952, 2
      %v954 = vrot.slane %v496, 7
      %v955 = vrot.slane %v954, 2
      %v956 = vrot.slane %v321, 7
      %v957 = vrot.slane %v956, 2
      %v958 = vrot.slane %v497, 7
      %v959 = vrot.slane %v958, 2
      %v960 = vrot.slane %v322, 7
      %v961 = vrot.slane %v960, 2
      %v962 = vrot.slane %v498, 7
      %v963 = vrot.slane %v962, 2
      %v964 = vrot.slane %v499, 7
      %v965 = vrot.slane %v964, 2
      %v966 = vrot.slane %v500, 7
      %v967 = vrot.slane %v966, 2
      %v968 = vrot.slane %v323, 7
      %v969 = vrot.slane %v968, 2
      %v970 = vrot.slane %v501, 7
      %v971 = vrot.slane %v970, 2
      %v972 = vrot.slane %v502, 7
      %v973 = vrot.slane %v972, 2
      %v974 = vrot.slane %v503, 7
      %v975 = vrot.slane %v974, 2
      %v976 = vrot.slane %v324, 7
      %v977 = vrot.slane %v976, 2
      %v978 = vrot.slane %v504, 7
      %v979 = vrot.slane %v978, 2
      %v980 = vrot.slane %v325, 7
      %v981 = vrot.slane %v980, 2
      %v982 = vrot.slane %v505, 7
      %v983 = vrot.slane %v982, 2
      %v984 = vrot.slane %v506, 7
      %v985 = vrot.slane %v984, 2
      %v986 = vrot.slane %v507, 7
      %v987 = vrot.slane %v986, 2
      %v988 = vrot.slane %v326, 7
      %v989 = vrot.slane %v988, 2
      %v990 = vrot.slane %v508, 7
      %v991 = vrot.slane %v990, 2
      %v992 = vrot.slane %v509, 7
      %v993 = vrot.slane %v992, 2
      %v994 = vrot.slane %v510, 7
      %v995 = vrot.slane %v994, 2
      %v996 = vrot.slane %v327, 7
      %v997 = vrot.slane %v996, 2
      %v998 = vrot.slane %v511, 7
      %v999 = vrot.slane %v998, 2
      %v1000 = vrot.slane %v328, 7
      %v1001 = vrot.slane %v1000, 2
      %v1002 = vrot.slane %v512, 7
      %v1003 = vrot.slane %v1002, 2
      %v1004 = vrot.slane %v513, 7
      %v1005 = vrot.slane %v1004, 2
      %v1006 = vrot.slane %v514, 7
      %v1007 = vrot.slane %v1006, 2
      %v1008 = vrot.slane %v329, 7
      %v1009 = vrot.slane %v1008, 2
      %v1010 = vrot.slane %v515, 7
      %v1011 = vrot.slane %v1010, 2
      %v1012 = vrot.slane %v516, 7
      %v1013 = vrot.slane %v1012, 2
      %v1014 = vrot.slane %v517, 7
      %v1015 = vrot.slane %v1014, 2
      %v1016 = vrot.slane %v330, 7
      %v1017 = vrot.slane %v1016, 2
      %v1018 = vrot.slane %v518, 7
      %v1019 = vrot.slane %v1018, 2
      %v1020 = vrot.slane %v331, 7
      %v1021 = vrot.slane %v1020, 2
      %v1022 = vrot.slane %v519, 7
      %v1023 = vrot.slane %v1022, 2
      %v1024 = vrot.slane %v520, 7
      %v1025 = vrot.slane %v1024, 2
      %v1026 = vrot.slane %v521, 7
      %v1027 = vrot.slane %v1026, 2
      %v1028 = vrot.slane %v332, 7
      %v1029 = vrot.slane %v1028, 2
      %v1030 = vrot.slane %v522, 7
      %v1031 = vrot.slane %v1030, 2
      %v1032 = vrot.slane %v523, 7
      %v1033 = vrot.slane %v1032, 2
      %v1034 = vrot.slane %v524, 7
      %v1035 = vrot.slane %v1034, 2
      %v1036 = vrot.slane %v333, 7
      %v1037 = vrot.slane %v1036, 2
      %v1038 = vrot.slane %v525, 7
      %v1039 = vrot.slane %v1038, 2
      %v1040 = vrot.slane %v334, 7
      %v1041 = vrot.slane %v1040, 2
      %v1042 = vrot.slane %v526, 7
      %v1043 = vrot.slane %v1042, 2
      %v1044 = vrot.slane %v527, 7
      %v1045 = vrot.slane %v1044, 2
      %v1046 = vrot.slane %v528, 7
      %v1047 = vrot.slane %v1046, 2
      %v1048 = vrot.slane %v335, 7
      %v1049 = vrot.slane %v1048, 2
      %v1050 = vrot.slane %v529, 7
      %v1051 = vrot.slane %v1050, 2
      %v1052 = vrot.slane %v530, 7
      %v1053 = vrot.slane %v1052, 2
      %v1054 = vrot.slane %v531, 7
      %v1055 = vrot.slane %v1054, 2
      %v1056 = vrot.slane %v336, 7
      %v1057 = vrot.slane %v1056, 2
      %v1058 = vrot.slane %v532, 7
      %v1059 = vrot.slane %v1058, 2
      %v1060 = vrot.slane %v337, 7
      %v1061 = vrot.slane %v1060, 2
      %v1062 = vrot.slane %v533, 7
      %v1063 = vrot.slane %v1062, 2
      %v1064 = vrot.slane %v534, 7
      %v1065 = vrot.slane %v1064, 2
      %v1066 = vrot.slane %v535, 7
      %v1067 = vrot.slane %v1066, 2
      %v1068 = vrot.slane %v338, 7
      %v1069 = vrot.slane %v1068, 2
      %v1070 = vrot.slane %v536, 7
      %v1071 = vrot.slane %v1070, 2
      %v1072 = vrot.slane %v537, 7
      %v1073 = vrot.slane %v1072, 2
      %v1074 = vrot.slane %v538, 7
      %v1075 = vrot.slane %v1074, 2
      %v1076 = vrot.slane %v339, 7
      %v1077 = vrot.slane %v1076, 2
      %v1078 = vrot.slane %v539, 7
      %v1079 = vrot.slane %v1078, 2
      %v1280 = vmax.f32 %v280, %v681
      %v1281 = vmax.f32 %v400, %v683
      %v1282 = vmax.f32 %v401, %v685
      %v1283 = vmax.f32 %v402, %v687
      %v1284 = vmax.f32 %v281, %v689
      %v1285 = vmax.f32 %v403, %v691
      %v1286 = vmax.f32 %v404, %v693
      %v1287 = vmax.f32 %v405, %v695
      %v1288 = vmax.f32 %v282, %v697
      %v1289 = vmax.f32 %v406, %v699
      %v1290 = vmax.f32 %v283, %v701
      %v1291 = vmax.f32 %v407, %v703
      %v1292 = vmax.f32 %v408, %v705
      %v1293 = vmax.f32 %v409, %v707
      %v1294 = vmax.f32 %v284, %v709
      %v1295 = vmax.f32 %v410, %v711
      %v1296 = vmax.f32 %v411, %v713
      %v1297 = vmax.f32 %v412, %v715
      %v1298 = vmax.f32 %v285, %v717
      %v1299 = vmax.f32 %v413, %v719
      %v1300 = vmax.f32 %v286, %v721
      %v1301 = vmax.f32 %v414, %v723
      %v1302 = vmax.f32 %v415, %v725
      %v1303 = vmax.f32 %v416, %v727
      %v1304 = vmax.f32 %v287, %v729
      %v1305 = vmax.f32 %v417, %v731
      %v1306 = vmax.f32 %v418, %v733
      %v1307 = vmax.f32 %v419, %v735
      %v1308 = vmax.f32 %v288, %v737
      %v1309 = vmax.f32 %v420, %v739
      %v1310 = vmax.f32 %v289, %v741
      %v1311 = vmax.f32 %v421, %v743
      %v1312 = vmax.f32 %v422, %v745
      %v1313 = vmax.f32 %v423, %v747
      %v1314 = vmax.f32 %v290, %v749
      %v1315 = vmax.f32 %v424, %v751
      %v1316 = vmax.f32 %v425, %v753
      %v1317 = vmax.f32 %v426, %v755
      %v1318 = vmax.f32 %v291, %v757
      %v1319 = vmax.f32 %v427, %v759
      %v1320 = vmax.f32 %v292, %v761
      %v1321 = vmax.f32 %v428, %v763
      %v1322 = vmax.f32 %v429, %v765
      %v1323 = vmax.f32 %v430, %v767
      %v1324 = vmax.f32 %v293, %v769
      %v1325 = vmax.f32 %v431, %v771
      %v1326 = vmax.f32 %v432, %v773
      %v1327 = vmax.f32 %v433, %v775
      %v1328 = vmax.f32 %v294, %v777
      %v1329 = vmax.f32 %v434, %v779
      %v1330 = vmax.f32 %v295, %v781
      %v1331 = vmax.f32 %v435, %v783
      %v1332 = vmax.f32 %v436, %v785
      %v1333 = vmax.f32 %v437, %v787
      %v1334 = vmax.f32 %v296, %v789
      %v1335 = vmax.f32 %v438, %v791
      %v1336 = vmax.f32 %v439, %v793
      %v1337 = vmax.f32 %v440, %v795
      %v1338 = vmax.f32 %v297, %v797
      %v1339 = vmax.f32 %v441, %v799
      %v1340 = vmax.f32 %v298, %v801
      %v1341 = vmax.f32 %v442, %v803
      %v1342 = vmax.f32 %v443, %v805
      %v1343 = vmax.f32 %v444, %v807
      %v1344 = vmax.f32 %v299, %v809
      %v1345 = vmax.f32 %v445, %v811
      %v1346 = vmax.f32 %v446, %v813
      %v1347 = vmax.f32 %v447, %v815
      %v1348 = vmax.f32 %v300, %v817
      %v1349 = vmax.f32 %v448, %v819
      %v1350 = vmax.f32 %v301, %v821
      %v1351 = vmax.f32 %v449, %v823
      %v1352 = vmax.f32 %v450, %v825
      %v1353 = vmax.f32 %v451, %v827
      %v1354 = vmax.f32 %v302, %v829
      %v1355 = vmax.f32 %v452, %v831
      %v1356 = vmax.f32 %v453, %v833
      %v1357 = vmax.f32 %v454, %v835
      %v1358 = vmax.f32 %v303, %v837
      %v1359 = vmax.f32 %v455, %v839
      %v1360 = vmax.f32 %v304, %v841
      %v1361 = vmax.f32 %v456, %v843
      %v1362 = vmax.f32 %v457, %v845
      %v1363 = vmax.f32 %v458, %v847
      %v1364 = vmax.f32 %v305, %v849
      %v1365 = vmax.f32 %v459, %v851
      %v1366 = vmax.f32 %v460, %v853
      %v1367 = vmax.f32 %v461, %v855
      %v1368 = vmax.f32 %v306, %v857
      %v1369 = vmax.f32 %v462, %v859
      %v1370 = vmax.f32 %v307, %v861
      %v1371 = vmax.f32 %v463, %v863
      %v1372 = vmax.f32 %v464, %v865
      %v1373 = vmax.f32 %v465, %v867
      %v1374 = vmax.f32 %v308, %v869
      %v1375 = vmax.f32 %v466, %v871
      %v1376 = vmax.f32 %v467, %v873
      %v1377 = vmax.f32 %v468, %v875
      %v1378 = vmax.f32 %v309, %v877
      %v1379 = vmax.f32 %v469, %v879
      %v1380 = vmax.f32 %v310, %v881
      %v1381 = vmax.f32 %v470, %v883
      %v1382 = vmax.f32 %v471, %v885
      %v1383 = vmax.f32 %v472, %v887
      %v1384 = vmax.f32 %v311, %v889
      %v1385 = vmax.f32 %v473, %v891
      %v1386 = vmax.f32 %v474, %v893
      %v1387 = vmax.f32 %v475, %v895
      %v1388 = vmax.f32 %v312, %v897
      %v1389 = vmax.f32 %v476, %v899
      %v1390 = vmax.f32 %v313, %v901
      %v1391 = vmax.f32 %v477, %v903
      %v1392 = vmax.f32 %v478, %v905
      %v1393 = vmax.f32 %v479, %v907
      %v1394 = vmax.f32 %v314, %v909
      %v1395 = vmax.f32 %v480, %v911
      %v1396 = vmax.f32 %v481, %v913
      %v1397 = vmax.f32 %v482, %v915
      %v1398 = vmax.f32 %v315, %v917
      %v1399 = vmax.f32 %v483, %v919
      %v1400 = vmax.f32 %v316, %v921
      %v1401 = vmax.f32 %v484, %v923
      %v1402 = vmax.f32 %v485, %v925
      %v1403 = vmax.f32 %v486, %v927
      %v1404 = vmax.f32 %v317, %v929
      %v1405 = vmax.f32 %v487, %v931
      %v1406 = vmax.f32 %v488, %v933
      %v1407 = vmax.f32 %v489, %v935
      %v1408 = vmax.f32 %v318, %v937
      %v1409 = vmax.f32 %v490, %v939
      %v1410 = vmax.f32 %v319, %v941
      %v1411 = vmax.f32 %v491, %v943
      %v1412 = vmax.f32 %v492, %v945
      %v1413 = vmax.f32 %v493, %v947
      %v1414 = vmax.f32 %v320, %v949
      %v1415 = vmax.f32 %v494, %v951
      %v1416 = vmax.f32 %v495, %v953
      %v1417 = vmax.f32 %v496, %v955
      %v1418 = vmax.f32 %v321, %v957
      %v1419 = vmax.f32 %v497, %v959
      %v1420 = vmax.f32 %v322, %v961
      %v1421 = vmax.f32 %v498, %v963
      %v1422 = vmax.f32 %v499, %v965
      %v1423 = vmax.f32 %v500, %v967
      %v1424 = vmax.f32 %v323, %v969
      %v1425 = vmax.f32 %v501, %v971
      %v1426 = vmax.f32 %v502, %v973
      %v1427 = vmax.f32 %v503, %v975
      %v1428 = vmax.f32 %v324, %v977
      %v1429 = vmax.f32 %v504, %v979
      %v1430 = vmax.f32 %v325, %v981
      %v1431 = vmax.f32 %v505, %v983
      %v1432 = vmax.f32 %v506, %v985
      %v1433 = vmax.f32 %v507, %v987
      %v1434 = vmax.f32 %v326, %v989
      %v1435 = vmax.f32 %v508, %v991
      %v1436 = vmax.f32 %v509, %v993
      %v1437 = vmax.f32 %v510, %v995
      %v1438 = vmax.f32 %v327, %v997
      %v1439 = vmax.f32 %v511, %v999
      %v1440 = vmax.f32 %v328, %v1001
      %v1441 = vmax.f32 %v512, %v1003
      %v1442 = vmax.f32 %v513, %v1005
      %v1443 = vmax.f32 %v514, %v1007
      %v1444 = vmax.f32 %v329, %v1009
      %v1445 = vmax.f32 %v515, %v1011
      %v1446 = vmax.f32 %v516, %v1013
      %v1447 = vmax.f32 %v517, %v1015
      %v1448 = vmax.f32 %v330, %v1017
      %v1449 = vmax.f32 %v518, %v1019
      %v1450 = vmax.f32 %v331, %v1021
      %v1451 = vmax.f32 %v519, %v1023
      %v1452 = vmax.f32 %v520, %v1025
      %v1453 = vmax.f32 %v521, %v1027
      %v1454 = vmax.f32 %v332, %v1029
      %v1455 = vmax.f32 %v522, %v1031
      %v1456 = vmax.f32 %v523, %v1033
      %v1457 = vmax.f32 %v524, %v1035
      %v1458 = vmax.f32 %v333, %v1037
      %v1459 = vmax.f32 %v525, %v1039
      %v1460 = vmax.f32 %v334, %v1041
      %v1461 = vmax.f32 %v526, %v1043
      %v1462 = vmax.f32 %v527, %v1045
      %v1463 = vmax.f32 %v528, %v1047
      %v1464 = vmax.f32 %v335, %v1049
      %v1465 = vmax.f32 %v529, %v1051
      %v1466 = vmax.f32 %v530, %v1053
      %v1467 = vmax.f32 %v531, %v1055
      %v1468 = vmax.f32 %v336, %v1057
      %v1469 = vmax.f32 %v532, %v1059
      %v1470 = vmax.f32 %v337, %v1061
      %v1471 = vmax.f32 %v533, %v1063
      %v1472 = vmax.f32 %v534, %v1065
      %v1473 = vmax.f32 %v535, %v1067
      %v1474 = vmax.f32 %v338, %v1069
      %v1475 = vmax.f32 %v536, %v1071
      %v1476 = vmax.f32 %v537, %v1073
      %v1477 = vmax.f32 %v538, %v1075
      %v1478 = vmax.f32 %v339, %v1077
      %v1479 = vmax.f32 %v539, %v1079
      %v1480 = vmax.f32 %v1280, %v1290
      %v1481 = vmax.f32 %v1281, %v1291
      %v1482 = vmax.f32 %v1282, %v1292
      %v1483 = vmax.f32 %v1283, %v1293
      %v1484 = vmax.f32 %v1284, %v1294
      %v1485 = vmax.f32 %v1285, %v1295
      %v1486 = vmax.f32 %v1286, %v1296
      %v1487 = vmax.f32 %v1287, %v1297
      %v1488 = vmax.f32 %v1288, %v1298
      %v1489 = vmax.f32 %v1289, %v1299
      %v1490 = vmax.f32 %v1300, %v1310
      %v1491 = vmax.f32 %v1301, %v1311
      %v1492 = vmax.f32 %v1302, %v1312
      %v1493 = vmax.f32 %v1303, %v1313
      %v1494 = vmax.f32 %v1304, %v1314
      %v1495 = vmax.f32 %v1305, %v1315
      %v1496 = vmax.f32 %v1306, %v1316
      %v1497 = vmax.f32 %v1307, %v1317
      %v1498 = vmax.f32 %v1308, %v1318
      %v1499 = vmax.f32 %v1309, %v1319
      %v1500 = vmax.f32 %v1320, %v1330
      %v1501 = vmax.f32 %v1321, %v1331
      %v1502 = vmax.f32 %v1322, %v1332
      %v1503 = vmax.f32 %v1323, %v1333
      %v1504 = vmax.f32 %v1324, %v1334
      %v1505 = vmax.f32 %v1325, %v1335
      %v1506 = vmax.f32 %v1326, %v1336
      %v1507 = vmax.f32 %v1327, %v1337
      %v1508 = vmax.f32 %v1328, %v1338
      %v1509 = vmax.f32 %v1329, %v1339
      %v1510 = vmax.f32 %v1340, %v1350
      %v1511 = vmax.f32 %v1341, %v1351
      %v1512 = vmax.f32 %v1342, %v1352
      %v1513 = vmax.f32 %v1343, %v1353
      %v1514 = vmax.f32 %v1344, %v1354
      %v1515 = vmax.f32 %v1345, %v1355
      %v1516 = vmax.f32 %v1346, %v1356
      %v1517 = vmax.f32 %v1347, %v1357
      %v1518 = vmax.f32 %v1348, %v1358
      %v1519 = vmax.f32 %v1349, %v1359
      %v1520 = vmax.f32 %v1360, %v1370
      %v1521 = vmax.f32 %v1361, %v1371
      %v1522 = vmax.f32 %v1362, %v1372
      %v1523 = vmax.f32 %v1363, %v1373
      %v1524 = vmax.f32 %v1364, %v1374
      %v1525 = vmax.f32 %v1365, %v1375
      %v1526 = vmax.f32 %v1366, %v1376
      %v1527 = vmax.f32 %v1367, %v1377
      %v1528 = vmax.f32 %v1368, %v1378
      %v1529 = vmax.f32 %v1369, %v1379
      %v1530 = vmax.f32 %v1380, %v1390
      %v1531 = vmax.f32 %v1381, %v1391
      %v1532 = vmax.f32 %v1382, %v1392
      %v1533 = vmax.f32 %v1383, %v1393
      %v1534 = vmax.f32 %v1384, %v1394
      %v1535 = vmax.f32 %v1385, %v1395
      %v1536 = vmax.f32 %v1386, %v1396
      %v1537 = vmax.f32 %v1387, %v1397
      %v1538 = vmax.f32 %v1388, %v1398
      %v1539 = vmax.f32 %v1389, %v1399
      %v1540 = vmax.f32 %v1400, %v1410
      %v1541 = vmax.f32 %v1401, %v1411
      %v1542 = vmax.f32 %v1402, %v1412
      %v1543 = vmax.f32 %v1403, %v1413
      %v1544 = vmax.f32 %v1404, %v1414
      %v1545 = vmax.f32 %v1405, %v1415
      %v1546 = vmax.f32 %v1406, %v1416
      %v1547 = vmax.f32 %v1407, %v1417
      %v1548 = vmax.f32 %v1408, %v1418
      %v1549 = vmax.f32 %v1409, %v1419
      %v1550 = vmax.f32 %v1420, %v1430
      %v1551 = vmax.f32 %v1421, %v1431
      %v1552 = vmax.f32 %v1422, %v1432
      %v1553 = vmax.f32 %v1423, %v1433
      %v1554 = vmax.f32 %v1424, %v1434
      %v1555 = vmax.f32 %v1425, %v1435
      %v1556 = vmax.f32 %v1426, %v1436
      %v1557 = vmax.f32 %v1427, %v1437
      %v1558 = vmax.f32 %v1428, %v1438
      %v1559 = vmax.f32 %v1429, %v1439
      %v1560 = vmax.f32 %v1440, %v1450
      %v1561 = vmax.f32 %v1441, %v1451
      %v1562 = vmax.f32 %v1442, %v1452
      %v1563 = vmax.f32 %v1443, %v1453
      %v1564 = vmax.f32 %v1444, %v1454
      %v1565 = vmax.f32 %v1445, %v1455
      %v1566 = vmax.f32 %v1446, %v1456
      %v1567 = vmax.f32 %v1447, %v1457
      %v1568 = vmax.f32 %v1448, %v1458
      %v1569 = vmax.f32 %v1449, %v1459
      %v1570 = vmax.f32 %v1460, %v1470
      %v1571 = vmax.f32 %v1461, %v1471
      %v1572 = vmax.f32 %v1462, %v1472
      %v1573 = vmax.f32 %v1463, %v1473
      %v1574 = vmax.f32 %v1464, %v1474
      %v1575 = vmax.f32 %v1465, %v1475
      %v1576 = vmax.f32 %v1466, %v1476
      %v1577 = vmax.f32 %v1467, %v1477
      %v1578 = vmax.f32 %v1468, %v1478
      %v1579 = vmax.f32 %v1469, %v1479
      %v1644 = vperm.slane %v1480, 0
      %v1645 = vperm.slane %v1481, 0
      %v1646 = vperm.slane %v1482, 0
      %v1647 = vperm.slane %v1483, 0
      %v1648 = vperm.slane %v1484, 0
      %v1649 = vperm.slane %v1485, 0
      %v1650 = vperm.slane %v1486, 0
      %v1651 = vperm.slane %v1487, 0
      %v1652 = vperm.slane %v1490, 0
      %v1653 = vperm.slane %v1491, 0
      %v1654 = vperm.slane %v1492, 0
      %v1655 = vperm.slane %v1493, 0
      %v1656 = vperm.slane %v1494, 0
      %v1657 = vperm.slane %v1495, 0
      %v1658 = vperm.slane %v1496, 0
      %v1659 = vperm.slane %v1497, 0
      %v1660 = vperm.slane %v1500, 0
      %v1661 = vperm.slane %v1501, 0
      %v1662 = vperm.slane %v1502, 0
      %v1663 = vperm.slane %v1503, 0
      %v1664 = vperm.slane %v1504, 0
      %v1665 = vperm.slane %v1505, 0
      %v1666 = vperm.slane %v1506, 0
      %v1667 = vperm.slane %v1507, 0
      %v1668 = vperm.slane %v1510, 0
      %v1669 = vperm.slane %v1511, 0
      %v1670 = vperm.slane %v1512, 0
      %v1671 = vperm.slane %v1513, 0
      %v1672 = vperm.slane %v1514, 0
      %v1673 = vperm.slane %v1515, 0
      %v1674 = vperm.slane %v1516, 0
      %v1675 = vperm.slane %v1517, 0
      %v1676 = vperm.slane %v1520, 0
      %v1677 = vperm.slane %v1521, 0
      %v1678 = vperm.slane %v1522, 0
      %v1679 = vperm.slane %v1523, 0
      %v1680 = vperm.slane %v1524, 0
      %v1681 = vperm.slane %v1525, 0
      %v1682 = vperm.slane %v1526, 0
      %v1683 = vperm.slane %v1527, 0
      %v1684 = vperm.slane %v1530, 0
      %v1685 = vperm.slane %v1531, 0
      %v1686 = vperm.slane %v1532, 0
      %v1687 = vperm.slane %v1533, 0
      %v1688 = vperm.slane %v1534, 0
      %v1689 = vperm.slane %v1535, 0
      %v1690 = vperm.slane %v1536, 0
      %v1691 = vperm.slane %v1537, 0
      %v1692 = vperm.slane %v1540, 0
      %v1693 = vperm.slane %v1541, 0
      %v1694 = vperm.slane %v1542, 0
      %v1695 = vperm.slane %v1543, 0
      %v1696 = vperm.slane %v1544, 0
      %v1697 = vperm.slane %v1545, 0
      %v1698 = vperm.slane %v1546, 0
      %v1699 = vperm.slane %v1547, 0
      %v1700 = vperm.slane %v1550, 0
      %v1701 = vperm.slane %v1551, 0
      %v1702 = vperm.slane %v1552, 0
      %v1703 = vperm.slane %v1553, 0
      %v1704 = vperm.slane %v1554, 0
      %v1705 = vperm.slane %v1555, 0
      %v1706 = vperm.slane %v1556, 0
      %v1707 = vperm.slane %v1557, 0
      %vm1708 = vcmask 1041409
      %v1709 = vsel %vm1708, %v1645, %v1644
      %vm1710 = vcmask 1042434
      %v1711 = vsel %vm1710, %v1646, %v1709
      %vm1712 = vcmask 1043459
      %v1713 = vsel %vm1712, %v1647, %v1711
      %vm1714 = vcmask 1044484
      %v1715 = vsel %vm1714, %v1648, %v1713
      %vm1716 = vcmask 1045509
      %v1717 = vsel %vm1716, %v1649, %v1715
      %vm1718 = vcmask 1046534
      %v1719 = vsel %vm1718, %v1650, %v1717
      %vm1720 = vcmask 1047559
      %v1721 = vsel %vm1720, %v1651, %v1719
      %v1722 = vsel %vm1708, %v1653, %v1652
      %v1723 = vsel %vm1710, %v1654, %v1722
      %v1724 = vsel %vm1712, %v1655, %v1723
      %v1725 = vsel %vm1714, %v1656, %v1724
      %v1726 = vsel %vm1716, %v1657, %v1725
      %v1727 = vsel %vm1718, %v1658, %v1726
      %v1728 = vsel %vm1720, %v1659, %v1727
      %v1729 = vsel %vm1708, %v1661, %v1660
      %v1730 = vsel %vm1710, %v1662, %v1729
      %v1731 = vsel %vm1712, %v1663, %v1730
      %v1732 = vsel %vm1714, %v1664, %v1731
      %v1733 = vsel %vm1716, %v1665, %v1732
      %v1734 = vsel %vm1718, %v1666, %v1733
      %v1735 = vsel %vm1720, %v1667, %v1734
      %v1736 = vsel %vm1708, %v1669, %v1668
      %v1737 = vsel %vm1710, %v1670, %v1736
      %v1738 = vsel %vm1712, %v1671, %v1737
      %v1739 = vsel %vm1714, %v1672, %v1738
      %v1740 = vsel %vm1716, %v1673, %v1739
      %v1741 = vsel %vm1718, %v1674, %v1740
      %v1742 = vsel %vm1720, %v1675, %v1741
      %v1743 = vsel %vm1708, %v1677, %v1676
      %v1744 = vsel %vm1710, %v1678, %v1743
      %v1745 = vsel %vm1712, %v1679, %v1744
      %v1746 = vsel %vm1714, %v1680, %v1745
      %v1747 = vsel %vm1716, %v1681, %v1746
      %v1748 = vsel %vm1718, %v1682, %v1747
      %v1749 = vsel %vm1720, %v1683, %v1748
      %v1750 = vsel %vm1708, %v1685, %v1684
      %v1751 = vsel %vm1710, %v1686, %v1750
      %v1752 = vsel %vm1712, %v1687, %v1751
      %v1753 = vsel %vm1714, %v1688, %v1752
      %v1754 = vsel %vm1716, %v1689, %v1753
      %v1755 = vsel %vm1718, %v1690, %v1754
      %v1756 = vsel %vm1720, %v1691, %v1755
      %v1757 = vsel %vm1708, %v1693, %v1692
      %v1758 = vsel %vm1710, %v1694, %v1757
      %v1759 = vsel %vm1712, %v1695, %v1758
      %v1760 = vsel %vm1714, %v1696, %v1759
      %v1761 = vsel %vm1716, %v1697, %v1760
      %v1762 = vsel %vm1718, %v1698, %v1761
      %v1763 = vsel %vm1720, %v1699, %v1762
      %v1764 = vsel %vm1708, %v1701, %v1700
      %v1765 = vsel %vm1710, %v1702, %v1764
      %v1766 = vsel %vm1712, %v1703, %v1765
      %v1767 = vsel %vm1714, %v1704, %v1766
      %v1768 = vsel %vm1716, %v1705, %v1767
      %v1769 = vsel %vm1718, %v1706, %v1768
      %v1770 = vsel %vm1720, %v1707, %v1769
      %v1787 = vperm.slane %v1488, 0
      %v1788 = vperm.slane %v1498, 0
      %v1789 = vperm.slane %v1508, 0
      %v1790 = vperm.slane %v1518, 0
      %v1791 = vperm.slane %v1528, 0
      %v1792 = vperm.slane %v1538, 0
      %v1793 = vperm.slane %v1548, 0
      %v1794 = vperm.slane %v1558, 0
      %v1795 = vsel %vm1708, %v1646, %v1645
      %v1796 = vsel %vm1710, %v1647, %v1795
      %v1797 = vsel %vm1712, %v1648, %v1796
      %v1798 = vsel %vm1714, %v1649, %v1797
      %v1799 = vsel %vm1716, %v1650, %v1798
      %v1800 = vsel %vm1718, %v1651, %v1799
      %v1801 = vsel %vm1720, %v1787, %v1800
      %v1802 = vsel %vm1708, %v1654, %v1653
      %v1803 = vsel %vm1710, %v1655, %v1802
      %v1804 = vsel %vm1712, %v1656, %v1803
      %v1805 = vsel %vm1714, %v1657, %v1804
      %v1806 = vsel %vm1716, %v1658, %v1805
      %v1807 = vsel %vm1718, %v1659, %v1806
      %v1808 = vsel %vm1720, %v1788, %v1807
      %v1809 = vsel %vm1708, %v1662, %v1661
      %v1810 = vsel %vm1710, %v1663, %v1809
      %v1811 = vsel %vm1712, %v1664, %v1810
      %v1812 = vsel %vm1714, %v1665, %v1811
      %v1813 = vsel %vm1716, %v1666, %v1812
      %v1814 = vsel %vm1718, %v1667, %v1813
      %v1815 = vsel %vm1720, %v1789, %v1814
      %v1816 = vsel %vm1708, %v1670, %v1669
      %v1817 = vsel %vm1710, %v1671, %v1816
      %v1818 = vsel %vm1712, %v1672, %v1817
      %v1819 = vsel %vm1714, %v1673, %v1818
      %v1820 = vsel %vm1716, %v1674, %v1819
      %v1821 = vsel %vm1718, %v1675, %v1820
      %v1822 = vsel %vm1720, %v1790, %v1821
      %v1823 = vsel %vm1708, %v1678, %v1677
      %v1824 = vsel %vm1710, %v1679, %v1823
      %v1825 = vsel %vm1712, %v1680, %v1824
      %v1826 = vsel %vm1714, %v1681, %v1825
      %v1827 = vsel %vm1716, %v1682, %v1826
      %v1828 = vsel %vm1718, %v1683, %v1827
      %v1829 = vsel %vm1720, %v1791, %v1828
      %v1830 = vsel %vm1708, %v1686, %v1685
      %v1831 = vsel %vm1710, %v1687, %v1830
      %v1832 = vsel %vm1712, %v1688, %v1831
      %v1833 = vsel %vm1714, %v1689, %v1832
      %v1834 = vsel %vm1716, %v1690, %v1833
      %v1835 = vsel %vm1718, %v1691, %v1834
      %v1836 = vsel %vm1720, %v1792, %v1835
      %v1837 = vsel %vm1708, %v1694, %v1693
      %v1838 = vsel %vm1710, %v1695, %v1837
      %v1839 = vsel %vm1712, %v1696, %v1838
      %v1840 = vsel %vm1714, %v1697, %v1839
      %v1841 = vsel %vm1716, %v1698, %v1840
      %v1842 = vsel %vm1718, %v1699, %v1841
      %v1843 = vsel %vm1720, %v1793, %v1842
      %v1844 = vsel %vm1708, %v1702, %v1701
      %v1845 = vsel %vm1710, %v1703, %v1844
      %v1846 = vsel %vm1712, %v1704, %v1845
      %v1847 = vsel %vm1714, %v1705, %v1846
      %v1848 = vsel %vm1716, %v1706, %v1847
      %v1849 = vsel %vm1718, %v1707, %v1848
      %v1850 = vsel %vm1720, %v1794, %v1849
      %1851 = vrot.lane.b32.xlu0 %v1801, 8
      %v1852 = vpop.permute.xlu0 %1851
      %1853 = vrot.lane.b32.xlu0 %v1808, 8
      %v1854 = vpop.permute.xlu0 %1853
      %1855 = vrot.lane.b32.xlu0 %v1815, 8
      %v1856 = vpop.permute.xlu0 %1855
      %1857 = vrot.lane.b32.xlu0 %v1822, 8
      %v1858 = vpop.permute.xlu0 %1857
      %1859 = vrot.lane.b32.xlu0 %v1829, 8
      %v1860 = vpop.permute.xlu0 %1859
      %1861 = vrot.lane.b32.xlu0 %v1836, 8
      %v1862 = vpop.permute.xlu0 %1861
      %1863 = vrot.lane.b32.xlu0 %v1843, 8
      %v1864 = vpop.permute.xlu0 %1863
      %1865 = vrot.lane.b32.xlu0 %v1850, 8
      %v1866 = vpop.permute.xlu0 %1865
      %v1883 = vperm.slane %v1489, 0
      %v1884 = vperm.slane %v1499, 0
      %v1885 = vperm.slane %v1509, 0
      %v1886 = vperm.slane %v1519, 0
      %v1887 = vperm.slane %v1529, 0
      %v1888 = vperm.slane %v1539, 0
      %v1889 = vperm.slane %v1549, 0
      %v1890 = vperm.slane %v1559, 0
      %v1891 = vsel %vm1708, %v1647, %v1646
      %v1892 = vsel %vm1710, %v1648, %v1891
      %v1893 = vsel %vm1712, %v1649, %v1892
      %v1894 = vsel %vm1714, %v1650, %v1893
      %v1895 = vsel %vm1716, %v1651, %v1894
      %v1896 = vsel %vm1718, %v1787, %v1895
      %v1897 = vsel %vm1720, %v1883, %v1896
      %v1898 = vsel %vm1708, %v1655, %v1654
      %v1899 = vsel %vm1710, %v1656, %v1898
      %v1900 = vsel %vm1712, %v1657, %v1899
      %v1901 = vsel %vm1714, %v1658, %v1900
      %v1902 = vsel %vm1716, %v1659, %v1901
      %v1903 = vsel %vm1718, %v1788, %v1902
      %v1904 = vsel %vm1720, %v1884, %v1903
      %v1905 = vsel %vm1708, %v1663, %v1662
      %v1906 = vsel %vm1710, %v1664, %v1905
      %v1907 = vsel %vm1712, %v1665, %v1906
      %v1908 = vsel %vm1714, %v1666, %v1907
      %v1909 = vsel %vm1716, %v1667, %v1908
      %v1910 = vsel %vm1718, %v1789, %v1909
      %v1911 = vsel %vm1720, %v1885, %v1910
      %v1912 = vsel %vm1708, %v1671, %v1670
      %v1913 = vsel %vm1710, %v1672, %v1912
      %v1914 = vsel %vm1712, %v1673, %v1913
      %v1915 = vsel %vm1714, %v1674, %v1914
      %v1916 = vsel %vm1716, %v1675, %v1915
      %v1917 = vsel %vm1718, %v1790, %v1916
      %v1918 = vsel %vm1720, %v1886, %v1917
      %v1919 = vsel %vm1708, %v1679, %v1678
      %v1920 = vsel %vm1710, %v1680, %v1919
      %v1921 = vsel %vm1712, %v1681, %v1920
      %v1922 = vsel %vm1714, %v1682, %v1921
      %v1923 = vsel %vm1716, %v1683, %v1922
      %v1924 = vsel %vm1718, %v1791, %v1923
      %v1925 = vsel %vm1720, %v1887, %v1924
      %v1926 = vsel %vm1708, %v1687, %v1686
      %v1927 = vsel %vm1710, %v1688, %v1926
      %v1928 = vsel %vm1712, %v1689, %v1927
      %v1929 = vsel %vm1714, %v1690, %v1928
      %v1930 = vsel %vm1716, %v1691, %v1929
      %v1931 = vsel %vm1718, %v1792, %v1930
      %v1932 = vsel %vm1720, %v1888, %v1931
      %v1933 = vsel %vm1708, %v1695, %v1694
      %v1934 = vsel %vm1710, %v1696, %v1933
      %v1935 = vsel %vm1712, %v1697, %v1934
      %v1936 = vsel %vm1714, %v1698, %v1935
      %v1937 = vsel %vm1716, %v1699, %v1936
      %v1938 = vsel %vm1718, %v1793, %v1937
      %v1939 = vsel %vm1720, %v1889, %v1938
      %v1940 = vsel %vm1708, %v1703, %v1702
      %v1941 = vsel %vm1710, %v1704, %v1940
      %v1942 = vsel %vm1712, %v1705, %v1941
      %v1943 = vsel %vm1714, %v1706, %v1942
      %v1944 = vsel %vm1716, %v1707, %v1943
      %v1945 = vsel %vm1718, %v1794, %v1944
      %v1946 = vsel %vm1720, %v1890, %v1945
      %1947 = vrot.lane.b32.xlu0 %v1897, 16
      %v1948 = vpop.permute.xlu0 %1947
      %1949 = vrot.lane.b32.xlu0 %v1904, 16
      %v1950 = vpop.permute.xlu0 %1949
      %1951 = vrot.lane.b32.xlu0 %v1911, 16
      %v1952 = vpop.permute.xlu0 %1951
      %1953 = vrot.lane.b32.xlu0 %v1918, 16
      %v1954 = vpop.permute.xlu0 %1953
      %1955 = vrot.lane.b32.xlu0 %v1925, 16
      %v1956 = vpop.permute.xlu0 %1955
      %1957 = vrot.lane.b32.xlu0 %v1932, 16
      %v1958 = vpop.permute.xlu0 %1957
      %1959 = vrot.lane.b32.xlu0 %v1939, 16
      %v1960 = vpop.permute.xlu0 %1959
      %1961 = vrot.lane.b32.xlu0 %v1946, 16
      %v1962 = vpop.permute.xlu0 %1961
      %v1979 = vperm.slane %v1560, 0
      %v1980 = vperm.slane %v1561, 0
      %v1981 = vperm.slane %v1562, 0
      %v1982 = vperm.slane %v1563, 0
      %v1983 = vperm.slane %v1564, 0
      %v1984 = vperm.slane %v1565, 0
      %v1985 = vperm.slane %v1566, 0
      %v1986 = vperm.slane %v1567, 0
      %v1987 = vsel %vm1708, %v1980, %v1979
      %v1988 = vsel %vm1710, %v1981, %v1987
      %v1989 = vsel %vm1712, %v1982, %v1988
      %v1990 = vsel %vm1714, %v1983, %v1989
      %v1991 = vsel %vm1716, %v1984, %v1990
      %v1992 = vsel %vm1718, %v1985, %v1991
      %v1993 = vsel %vm1720, %v1986, %v1992
      %1994 = vrot.lane.b32.xlu0 %v1728, 24
      %v1995 = vpop.permute.xlu0 %1994
      %1996 = vrot.lane.b32.xlu0 %v1735, 24
      %v1997 = vpop.permute.xlu0 %1996
      %1998 = vrot.lane.b32.xlu0 %v1742, 24
      %v1999 = vpop.permute.xlu0 %1998
      %2000 = vrot.lane.b32.xlu0 %v1749, 24
      %v2001 = vpop.permute.xlu0 %2000
      %2002 = vrot.lane.b32.xlu0 %v1756, 24
      %v2003 = vpop.permute.xlu0 %2002
      %2004 = vrot.lane.b32.xlu0 %v1763, 24
      %v2005 = vpop.permute.xlu0 %2004
      %2006 = vrot.lane.b32.xlu0 %v1770, 24
      %v2007 = vpop.permute.xlu0 %2006
      %2008 = vrot.lane.b32.xlu0 %v1993, 24
      %v2009 = vpop.permute.xlu0 %2008
      %v2019 = vperm.slane %v1568, 0
      %v2020 = vsel %vm1708, %v1981, %v1980
      %v2021 = vsel %vm1710, %v1982, %v2020
      %v2022 = vsel %vm1712, %v1983, %v2021
      %v2023 = vsel %vm1714, %v1984, %v2022
      %v2024 = vsel %vm1716, %v1985, %v2023
      %v2025 = vsel %vm1718, %v1986, %v2024
      %v2026 = vsel %vm1720, %v2019, %v2025
      %2027 = vrot.lane.b32.xlu0 %v1808, 32
      %v2028 = vpop.permute.xlu0 %2027
      %2029 = vrot.lane.b32.xlu0 %v1815, 32
      %v2030 = vpop.permute.xlu0 %2029
      %2031 = vrot.lane.b32.xlu0 %v1822, 32
      %v2032 = vpop.permute.xlu0 %2031
      %2033 = vrot.lane.b32.xlu0 %v1829, 32
      %v2034 = vpop.permute.xlu0 %2033
      %2035 = vrot.lane.b32.xlu0 %v1836, 32
      %v2036 = vpop.permute.xlu0 %2035
      %2037 = vrot.lane.b32.xlu0 %v1843, 32
      %v2038 = vpop.permute.xlu0 %2037
      %2039 = vrot.lane.b32.xlu0 %v1850, 32
      %v2040 = vpop.permute.xlu0 %2039
      %2041 = vrot.lane.b32.xlu0 %v2026, 32
      %v2042 = vpop.permute.xlu0 %2041
      %v2052 = vperm.slane %v1569, 0
      %v2053 = vsel %vm1708, %v1982, %v1981
      %v2054 = vsel %vm1710, %v1983, %v2053
      %v2055 = vsel %vm1712, %v1984, %v2054
      %v2056 = vsel %vm1714, %v1985, %v2055
      %v2057 = vsel %vm1716, %v1986, %v2056
      %v2058 = vsel %vm1718, %v2019, %v2057
      %v2059 = vsel %vm1720, %v2052, %v2058
      %2060 = vrot.lane.b32.xlu0 %v1904, 40
      %v2061 = vpop.permute.xlu0 %2060
      %2062 = vrot.lane.b32.xlu0 %v1911, 40
      %v2063 = vpop.permute.xlu0 %2062
      %2064 = vrot.lane.b32.xlu0 %v1918, 40
      %v2065 = vpop.permute.xlu0 %2064
      %2066 = vrot.lane.b32.xlu0 %v1925, 40
      %v2067 = vpop.permute.xlu0 %2066
      %2068 = vrot.lane.b32.xlu0 %v1932, 40
      %v2069 = vpop.permute.xlu0 %2068
      %2070 = vrot.lane.b32.xlu0 %v1939, 40
      %v2071 = vpop.permute.xlu0 %2070
      %2072 = vrot.lane.b32.xlu0 %v1946, 40
      %v2073 = vpop.permute.xlu0 %2072
      %2074 = vrot.lane.b32.xlu0 %v2059, 40
      %v2075 = vpop.permute.xlu0 %2074
      %v2092 = vperm.slane %v1570, 0
      %v2093 = vperm.slane %v1571, 0
      %v2094 = vperm.slane %v1572, 0
      %v2095 = vperm.slane %v1573, 0
      %v2096 = vperm.slane %v1574, 0
      %v2097 = vperm.slane %v1575, 0
      %v2098 = vperm.slane %v1576, 0
      %v2099 = vperm.slane %v1577, 0
      %v2100 = vsel %vm1708, %v2093, %v2092
      %v2101 = vsel %vm1710, %v2094, %v2100
      %v2102 = vsel %vm1712, %v2095, %v2101
      %v2103 = vsel %vm1714, %v2096, %v2102
      %v2104 = vsel %vm1716, %v2097, %v2103
      %v2105 = vsel %vm1718, %v2098, %v2104
      %v2106 = vsel %vm1720, %v2099, %v2105
      %2107 = vrot.lane.b32.xlu0 %v1735, 48
      %v2108 = vpop.permute.xlu0 %2107
      %2109 = vrot.lane.b32.xlu0 %v1742, 48
      %v2110 = vpop.permute.xlu0 %2109
      %2111 = vrot.lane.b32.xlu0 %v1749, 48
      %v2112 = vpop.permute.xlu0 %2111
      %2113 = vrot.lane.b32.xlu0 %v1756, 48
      %v2114 = vpop.permute.xlu0 %2113
      %2115 = vrot.lane.b32.xlu0 %v1763, 48
      %v2116 = vpop.permute.xlu0 %2115
      %2117 = vrot.lane.b32.xlu0 %v1770, 48
      %v2118 = vpop.permute.xlu0 %2117
      %2119 = vrot.lane.b32.xlu0 %v1993, 48
      %v2120 = vpop.permute.xlu0 %2119
      %2121 = vrot.lane.b32.xlu0 %v2106, 48
      %v2122 = vpop.permute.xlu0 %2121
      %v2132 = vperm.slane %v1578, 0
      %v2133 = vsel %vm1708, %v2094, %v2093
      %v2134 = vsel %vm1710, %v2095, %v2133
      %v2135 = vsel %vm1712, %v2096, %v2134
      %v2136 = vsel %vm1714, %v2097, %v2135
      %v2137 = vsel %vm1716, %v2098, %v2136
      %v2138 = vsel %vm1718, %v2099, %v2137
      %v2139 = vsel %vm1720, %v2132, %v2138
      %2140 = vrot.lane.b32.xlu0 %v1815, 56
      %v2141 = vpop.permute.xlu0 %2140
      %2142 = vrot.lane.b32.xlu0 %v1822, 56
      %v2143 = vpop.permute.xlu0 %2142
      %2144 = vrot.lane.b32.xlu0 %v1829, 56
      %v2145 = vpop.permute.xlu0 %2144
      %2146 = vrot.lane.b32.xlu0 %v1836, 56
      %v2147 = vpop.permute.xlu0 %2146
      %2148 = vrot.lane.b32.xlu0 %v1843, 56
      %v2149 = vpop.permute.xlu0 %2148
      %2150 = vrot.lane.b32.xlu0 %v1850, 56
      %v2151 = vpop.permute.xlu0 %2150
      %2152 = vrot.lane.b32.xlu0 %v2026, 56
      %v2153 = vpop.permute.xlu0 %2152
      %2154 = vrot.lane.b32.xlu0 %v2139, 56
      %v2155 = vpop.permute.xlu0 %2154
      %v2165 = vperm.slane %v1579, 0
      %v2166 = vsel %vm1708, %v2095, %v2094
      %v2167 = vsel %vm1710, %v2096, %v2166
      %v2168 = vsel %vm1712, %v2097, %v2167
      %v2169 = vsel %vm1714, %v2098, %v2168
      %v2170 = vsel %vm1716, %v2099, %v2169
      %v2171 = vsel %vm1718, %v2132, %v2170
      %v2172 = vsel %vm1720, %v2165, %v2171
      %2173 = vrot.lane.b32.xlu0 %v1911, 64
      %v2174 = vpop.permute.xlu0 %2173
      %2175 = vrot.lane.b32.xlu0 %v1918, 64
      %v2176 = vpop.permute.xlu0 %2175
      %2177 = vrot.lane.b32.xlu0 %v1925, 64
      %v2178 = vpop.permute.xlu0 %2177
      %2179 = vrot.lane.b32.xlu0 %v1932, 64
      %v2180 = vpop.permute.xlu0 %2179
      %2181 = vrot.lane.b32.xlu0 %v1939, 64
      %v2182 = vpop.permute.xlu0 %2181
      %2183 = vrot.lane.b32.xlu0 %v1946, 64
      %v2184 = vpop.permute.xlu0 %2183
      %2185 = vrot.lane.b32.xlu0 %v2059, 64
      %v2186 = vpop.permute.xlu0 %2185
      %2187 = vrot.lane.b32.xlu0 %v2172, 64
      %v2188 = vpop.permute.xlu0 %2187
      %vm2197 = vcmask 64512
      %v2198 = vsel %vm2197, %v1721, %v1852
      %v2199 = vsel %vm2197, %v1728, %v1854
      %v2200 = vsel %vm2197, %v1735, %v1856
      %v2201 = vsel %vm2197, %v1742, %v1858
      %v2202 = vsel %vm2197, %v1749, %v1860
      %v2203 = vsel %vm2197, %v1756, %v1862
      %v2204 = vsel %vm2197, %v1763, %v1864
      %v2205 = vsel %vm2197, %v1770, %v1866
      %vm2206 = vcmask 130048
      %v2207 = vsel %vm2206, %v2198, %v1948
      %v2208 = vsel %vm2206, %v2199, %v1950
      %v2209 = vsel %vm2206, %v2200, %v1952
      %v2210 = vsel %vm2206, %v2201, %v1954
      %v2211 = vsel %vm2206, %v2202, %v1956
      %v2212 = vsel %vm2206, %v2203, %v1958
      %v2213 = vsel %vm2206, %v2204, %v1960
      %v2214 = vsel %vm2206, %v2205, %v1962
      %vm2215 = vcmask 195584
      %v2216 = vsel %vm2215, %v2207, %v1995
      %v2217 = vsel %vm2215, %v2208, %v1997
      %v2218 = vsel %vm2215, %v2209, %v1999
      %v2219 = vsel %vm2215, %v2210, %v2001
      %v2220 = vsel %vm2215, %v2211, %v2003
      %v2221 = vsel %vm2215, %v2212, %v2005
      %v2222 = vsel %vm2215, %v2213, %v2007
      %v2223 = vsel %vm2215, %v2214, %v2009
      %vm2224 = vcmask 261120
      %v2225 = vsel %vm2224, %v2216, %v2028
      %v2226 = vsel %vm2224, %v2217, %v2030
      %v2227 = vsel %vm2224, %v2218, %v2032
      %v2228 = vsel %vm2224, %v2219, %v2034
      %v2229 = vsel %vm2224, %v2220, %v2036
      %v2230 = vsel %vm2224, %v2221, %v2038
      %v2231 = vsel %vm2224, %v2222, %v2040
      %v2232 = vsel %vm2224, %v2223, %v2042
      %vm2233 = vcmask 326656
      %v2234 = vsel %vm2233, %v2225, %v2061
      %v2235 = vsel %vm2233, %v2226, %v2063
      %v2236 = vsel %vm2233, %v2227, %v2065
      %v2237 = vsel %vm2233, %v2228, %v2067
      %v2238 = vsel %vm2233, %v2229, %v2069
      %v2239 = vsel %vm2233, %v2230, %v2071
      %v2240 = vsel %vm2233, %v2231, %v2073
      %v2241 = vsel %vm2233, %v2232, %v2075
      %vm2242 = vcmask 392192
      %v2243 = vsel %vm2242, %v2234, %v2108
      %v2244 = vsel %vm2242, %v2235, %v2110
      %v2245 = vsel %vm2242, %v2236, %v2112
      %v2246 = vsel %vm2242, %v2237, %v2114
      %v2247 = vsel %vm2242, %v2238, %v2116
      %v2248 = vsel %vm2242, %v2239, %v2118
      %v2249 = vsel %vm2242, %v2240, %v2120
      %v2250 = vsel %vm2242, %v2241, %v2122
      %vm2251 = vcmask 457728
      %v2252 = vsel %vm2251, %v2243, %v2141
      %v2253 = vsel %vm2251, %v2244, %v2143
      %v2254 = vsel %vm2251, %v2245, %v2145
      %v2255 = vsel %vm2251, %v2246, %v2147
      %v2256 = vsel %vm2251, %v2247, %v2149
      %v2257 = vsel %vm2251, %v2248, %v2151
      %v2258 = vsel %vm2251, %v2249, %v2153
      %v2259 = vsel %vm2251, %v2250, %v2155
      %vm2260 = vcmask 523264
      %v2261 = vsel %vm2260, %v2252, %v2174
      %v2262 = vsel %vm2260, %v2253, %v2176
      %v2263 = vsel %vm2260, %v2254, %v2178
      %v2264 = vsel %vm2260, %v2255, %v2180
      %v2265 = vsel %vm2260, %v2256, %v2182
      %v2266 = vsel %vm2260, %v2257, %v2184
      %v2267 = vsel %vm2260, %v2258, %v2186
      %v2268 = vsel %vm2260, %v2259, %v2188
      %v2269 = vpack.c.bf16 %v2261, %v2261
      %v2270 = vpack.c.bf16 %v2262, %v2262
      %v2271 = vpack.c.bf16 %v2263, %v2263
      %v2272 = vpack.c.bf16 %v2264, %v2264
      %v2273 = vpack.c.bf16 %v2265, %v2265
      %v2274 = vpack.c.bf16 %v2266, %v2266
      %v2275 = vpack.c.bf16 %v2267, %v2267
      %v2276 = vpack.c.bf16 %v2268, %v2268
      %v2277 = vld [vmem:[%s1] sm:$0xf]
      %v2278 = vld [vmem:[%s1 + $0x4] sm:$0xf]
      %v2279 = vld [vmem:[%s1 + $0x8] sm:$0xf]
      %v2280 = vld [vmem:[%s1 + $0xc] sm:$0xf]
      %v2281 = vld [vmem:[%s1 + $0x10] sm:$0xf]
      %v2282 = vld [vmem:[%s1 + $0x14] sm:$0xf]
      %v2283 = vld [vmem:[%s1 + $0x18] sm:$0xf]
      %v2284 = vld [vmem:[%s1 + $0x1c] sm:$0xf]
      %v2285 = vld [vmem:[%s1 + $0x20] sm:$0xf]
      %v2294 = vunpack.c.l.b16 %v2269
      %v2295 = vunpack.c.l.b16 %v2270
      %v2296 = vunpack.c.l.b16 %v2271
      %v2297 = vunpack.c.l.b16 %v2272
      %v2298 = vunpack.c.l.b16 %v2273
      %v2299 = vunpack.c.l.b16 %v2274
      %v2300 = vunpack.c.l.b16 %v2275
      %v2301 = vunpack.c.l.b16 %v2276
      %v2302 = vpack.c.b16 %v2295, %v2294
      %v2303 = vpack.c.b16 %v2297, %v2296
      %v2304 = vpack.c.b16 %v2299, %v2298
      %v2305 = vpack.c.b16 %v2301, %v2300
      %v2315 = vunpack.c.l.b16 %v2277
      %v2316 = vunpack.c.l.b16 %v2278
      %v2317 = vunpack.c.l.b16 %v2279
      %v2318 = vunpack.c.l.b16 %v2280
      %v2319 = vunpack.c.l.b16 %v2281
      %v2320 = vunpack.c.l.b16 %v2282
      %v2321 = vunpack.c.l.b16 %v2283
      %v2322 = vunpack.c.l.b16 %v2284
      %v2323 = vunpack.c.l.b16 %v2285
      %v2324 = vpack.c.b16 %v2316, %v2315
      %v2325 = vpack.c.b16 %v2318, %v2317
      %v2326 = vpack.c.b16 %v2320, %v2319
      %v2327 = vpack.c.b16 %v2322, %v2321
      %v2328 = vpack.c.b16 %v2323, %v2323
      %vm2333 = vcmask 588800
      %v2335 = vsel %vm2333, %v2302, 0
      %v2338 = vsel %vm2333, %v2303, 0
      %v2341 = vsel %vm2333, %v2304, 0
      %v2344 = vsel %vm2333, %v2305, 0
      %vm2346 = vcmask 1043456
      %v2348 = vsel %vm2346, %v2328, 0
      %2350 = vmatpush.bf16.msra.mxu0 0
      %2351 = vmatpush.bf16.msra.mxu0 0
      %2352 = vmatpush.bf16.msra.mxu0 0
      %2353 = vmatpush.bf16.msra.mxu0 %v2348
      %2354 = vmatpush.bf16.msra.mxu0 %v2327
      %2355 = vmatpush.bf16.msra.mxu0 %v2326
      %2356 = vmatpush.bf16.msra.mxu0 %v2325
      %2357 = vmatpush.bf16.msra.mxu0 %v2324
      %2358 = vmatmul.bf16.gmra.mxu0 %v2335
      %v2359 = vpop.f32.mrf.mxu0
      %v2360 = vadd.f32 0.0, %v2359
      %v2361 = vpop.f32.mrf.mxu0
      %v2362 = vadd.f32 0.0, %v2361
      %2363 = vmatmul.bf16.gmra.mxu0 %v2338
      %v2364 = vpop.f32.mrf.mxu0
      %v2365 = vadd.f32 0.0, %v2364
      %v2366 = vpop.f32.mrf.mxu0
      %v2367 = vadd.f32 0.0, %v2366
      %2368 = vmatmul.bf16.gmra.mxu0 %v2341
      %v2369 = vpop.f32.mrf.mxu0
      %v2370 = vadd.f32 0.0, %v2369
      %v2371 = vpop.f32.mrf.mxu0
      %v2372 = vadd.f32 0.0, %v2371
      %2373 = vmatmul.bf16.gmra.mxu0 %v2344
      %v2374 = vpop.f32.mrf.mxu0
      %v2375 = vadd.f32 0.0, %v2374
      %v2376 = vpop.f32.mrf.mxu0
      %v2377 = vadd.f32 0.0, %v2376
      %2378 = vdwg.mxu0
      %v2379 = vld [vmem:[%s2] sm:$0x1]
      %v2381 = vperm.slane %v2379, 0
      %v2383 = vmul.f32 %v2360, %v2381
      %v2384 = vmul.f32 %v2362, %v2381
      %v2385 = vmul.f32 %v2365, %v2381
      %v2386 = vmul.f32 %v2367, %v2381
      %v2387 = vmul.f32 %v2370, %v2381
      %v2388 = vmul.f32 %v2372, %v2381
      %v2389 = vmul.f32 %v2375, %v2381
      %v2390 = vmul.f32 %v2377, %v2381
      %v2391 = vld [vmem:[%s3] sm:$0x1]
      %v2393 = vperm.slane %v2391, 0
      %v2395 = vadd.f32 %v2383, %v2393
      %v2396 = vadd.f32 %v2384, %v2393
      %v2397 = vadd.f32 %v2385, %v2393
      %v2398 = vadd.f32 %v2386, %v2393
      %v2399 = vadd.f32 %v2387, %v2393
      %v2400 = vadd.f32 %v2388, %v2393
      %v2401 = vadd.f32 %v2389, %v2393
      %v2402 = vadd.f32 %v2390, %v2393
      %v2403 = vmax.f32 %v2395, 0.0
      %v2404 = vmax.f32 %v2396, 0.0
      %v2405 = vmax.f32 %v2397, 0.0
      %v2406 = vmax.f32 %v2398, 0.0
      %v2407 = vmax.f32 %v2399, 0.0
      %v2408 = vmax.f32 %v2400, 0.0
      %v2409 = vmax.f32 %v2401, 0.0
      %v2410 = vmax.f32 %v2402, 0.0
      %v2417 = vrot.slane %v2403, 1
      %v2418 = vrot.slane %v2404, 1
      %v2419 = vrot.slane %v2405, 1
      %v2420 = vrot.slane %v2406, 1
      %v2421 = vrot.slane %v2407, 1
      %v2422 = vrot.slane %v2408, 1
      %2423 = vrot.lane.b32.xlu0 %v2417, 16
      %v2424 = vpop.permute.xlu0 %2423
      %2425 = vrot.lane.b32.xlu0 %v2418, 16
      %v2426 = vpop.permute.xlu0 %2425
      %2427 = vrot.lane.b32.xlu0 %v2419, 16
      %v2428 = vpop.permute.xlu0 %2427
      %2429 = vrot.lane.b32.xlu0 %v2420, 16
      %v2430 = vpop.permute.xlu0 %2429
      %2431 = vrot.lane.b32.xlu0 %v2421, 16
      %v2432 = vpop.permute.xlu0 %2431
      %2433 = vrot.lane.b32.xlu0 %v2422, 16
      %v2434 = vpop.permute.xlu0 %2433
      %v2441 = vrot.slane %v2403, 2
      %v2442 = vrot.slane %v2404, 2
      %v2443 = vrot.slane %v2405, 2
      %v2444 = vrot.slane %v2406, 2
      %v2445 = vrot.slane %v2407, 2
      %v2446 = vrot.slane %v2408, 2
      %2447 = vrot.lane.b32.xlu0 %v2441, 32
      %v2448 = vpop.permute.xlu0 %2447
      %2449 = vrot.lane.b32.xlu0 %v2442, 32
      %v2450 = vpop.permute.xlu0 %2449
      %2451 = vrot.lane.b32.xlu0 %v2443, 32
      %v2452 = vpop.permute.xlu0 %2451
      %2453 = vrot.lane.b32.xlu0 %v2444, 32
      %v2454 = vpop.permute.xlu0 %2453
      %2455 = vrot.lane.b32.xlu0 %v2445, 32
      %v2456 = vpop.permute.xlu0 %2455
      %2457 = vrot.lane.b32.xlu0 %v2446, 32
      %v2458 = vpop.permute.xlu0 %2457
      %2466 = vrot.lane.b32.xlu0 %v2404, 48
      %v2467 = vpop.permute.xlu0 %2466
      %2468 = vrot.lane.b32.xlu0 %v2405, 48
      %v2469 = vpop.permute.xlu0 %2468
      %2470 = vrot.lane.b32.xlu0 %v2406, 48
      %v2471 = vpop.permute.xlu0 %2470
      %2472 = vrot.lane.b32.xlu0 %v2407, 48
      %v2473 = vpop.permute.xlu0 %2472
      %2474 = vrot.lane.b32.xlu0 %v2408, 48
      %v2475 = vpop.permute.xlu0 %2474
      %2476 = vrot.lane.b32.xlu0 %v2409, 48
      %v2477 = vpop.permute.xlu0 %2476
      %v2484 = vrot.slane %v2409, 1
      %2485 = vrot.lane.b32.xlu0 %v2418, 64
      %v2486 = vpop.permute.xlu0 %2485
      %2487 = vrot.lane.b32.xlu0 %v2419, 64
      %v2488 = vpop.permute.xlu0 %2487
      %2489 = vrot.lane.b32.xlu0 %v2420, 64
      %v2490 = vpop.permute.xlu0 %2489
      %2491 = vrot.lane.b32.xlu0 %v2421, 64
      %v2492 = vpop.permute.xlu0 %2491
      %2493 = vrot.lane.b32.xlu0 %v2422, 64
      %v2494 = vpop.permute.xlu0 %2493
      %2495 = vrot.lane.b32.xlu0 %v2484, 64
      %v2496 = vpop.permute.xlu0 %2495
      %v2503 = vrot.slane %v2409, 2
      %2504 = vrot.lane.b32.xlu0 %v2442, 80
      %v2505 = vpop.permute.xlu0 %2504
      %2506 = vrot.lane.b32.xlu0 %v2443, 80
      %v2507 = vpop.permute.xlu0 %2506
      %2508 = vrot.lane.b32.xlu0 %v2444, 80
      %v2509 = vpop.permute.xlu0 %2508
      %2510 = vrot.lane.b32.xlu0 %v2445, 80
      %v2511 = vpop.permute.xlu0 %2510
      %2512 = vrot.lane.b32.xlu0 %v2446, 80
      %v2513 = vpop.permute.xlu0 %2512
      %2514 = vrot.lane.b32.xlu0 %v2503, 80
      %v2515 = vpop.permute.xlu0 %2514
      %2523 = vrot.lane.b32.xlu0 %v2405, 96
      %v2524 = vpop.permute.xlu0 %2523
      %2525 = vrot.lane.b32.xlu0 %v2406, 96
      %v2526 = vpop.permute.xlu0 %2525
      %2527 = vrot.lane.b32.xlu0 %v2407, 96
      %v2528 = vpop.permute.xlu0 %2527
      %2529 = vrot.lane.b32.xlu0 %v2408, 96
      %v2530 = vpop.permute.xlu0 %2529
      %2531 = vrot.lane.b32.xlu0 %v2409, 96
      %v2532 = vpop.permute.xlu0 %2531
      %2533 = vrot.lane.b32.xlu0 %v2410, 96
      %v2534 = vpop.permute.xlu0 %2533
      %v2541 = vrot.slane %v2410, 1
      %2542 = vrot.lane.b32.xlu0 %v2419, 112
      %v2543 = vpop.permute.xlu0 %2542
      %2544 = vrot.lane.b32.xlu0 %v2420, 112
      %v2545 = vpop.permute.xlu0 %2544
      %2546 = vrot.lane.b32.xlu0 %v2421, 112
      %v2547 = vpop.permute.xlu0 %2546
      %2548 = vrot.lane.b32.xlu0 %v2422, 112
      %v2549 = vpop.permute.xlu0 %2548
      %2550 = vrot.lane.b32.xlu0 %v2484, 112
      %v2551 = vpop.permute.xlu0 %2550
      %2552 = vrot.lane.b32.xlu0 %v2541, 112
      %v2553 = vpop.permute.xlu0 %2552
      %v2560 = vrot.slane %v2410, 2
      %v2567 = vsel %vm2206, %v2403, %v2424
      %v2568 = vsel %vm2206, %v2404, %v2426
      %v2569 = vsel %vm2206, %v2405, %v2428
      %v2570 = vsel %vm2206, %v2406, %v2430
      %v2571 = vsel %vm2206, %v2407, %v2432
      %v2572 = vsel %vm2206, %v2408, %v2434
      %v2573 = vsel %vm2224, %v2567, %v2448
      %v2574 = vsel %vm2224, %v2568, %v2450
      %v2575 = vsel %vm2224, %v2569, %v2452
      %v2576 = vsel %vm2224, %v2570, %v2454
      %v2577 = vsel %vm2224, %v2571, %v2456
      %v2578 = vsel %vm2224, %v2572, %v2458
      %v2579 = vsel %vm2242, %v2573, %v2467
      %v2580 = vsel %vm2242, %v2574, %v2469
      %v2581 = vsel %vm2242, %v2575, %v2471
      %v2582 = vsel %vm2242, %v2576, %v2473
      %v2583 = vsel %vm2242, %v2577, %v2475
      %v2584 = vsel %vm2242, %v2578, %v2477
      %v2585 = vsel %vm2260, %v2579, %v2486
      %v2586 = vsel %vm2260, %v2580, %v2488
      %v2587 = vsel %vm2260, %v2581, %v2490
      %v2588 = vsel %vm2260, %v2582, %v2492
      %v2589 = vsel %vm2260, %v2583, %v2494
      %v2590 = vsel %vm2260, %v2584, %v2496
      %vm2591 = vcmask 654336
      %v2592 = vsel %vm2591, %v2585, %v2505
      %v2593 = vsel %vm2591, %v2586, %v2507
      %v2594 = vsel %vm2591, %v2587, %v2509
      %v2595 = vsel %vm2591, %v2588, %v2511
      %v2596 = vsel %vm2591, %v2589, %v2513
      %v2597 = vsel %vm2591, %v2590, %v2515
      %vm2598 = vcmask 785408
      %v2599 = vsel %vm2598, %v2592, %v2524
      %v2600 = vsel %vm2598, %v2593, %v2526
      %v2601 = vsel %vm2598, %v2594, %v2528
      %v2602 = vsel %vm2598, %v2595, %v2530
      %v2603 = vsel %vm2598, %v2596, %v2532
      %v2604 = vsel %vm2598, %v2597, %v2534
      %vm2605 = vcmask 916480
      %v2606 = vsel %vm2605, %v2599, %v2543
      %v2607 = vsel %vm2605, %v2600, %v2545
      %v2608 = vsel %vm2605, %v2601, %v2547
      %v2609 = vsel %vm2605, %v2602, %v2549
      %v2610 = vsel %vm2605, %v2603, %v2551
      %v2611 = vsel %vm2605, %v2604, %v2553
      %v2612 = vpack.c.bf16 %v2443, %v2606
      %v2613 = vpack.c.bf16 %v2444, %v2607
      %v2614 = vpack.c.bf16 %v2445, %v2608
      %v2615 = vpack.c.bf16 %v2446, %v2609
      %v2616 = vpack.c.bf16 %v2503, %v2610
      %v2617 = vpack.c.bf16 %v2560, %v2611
      %v2618 = vld [vmem:[%s4] sm:$0xf]
      %v2619 = vld [vmem:[%s4 + $0x4] sm:$0xf]
      %v2620 = vld [vmem:[%s4 + $0x8] sm:$0xf]
      %v2621 = vld [vmem:[%s4 + $0xc] sm:$0xf]
      %v2622 = vld [vmem:[%s4 + $0x10] sm:$0xf]
      %v2623 = vld [vmem:[%s4 + $0x14] sm:$0xf]
      %v2624 = vld [vmem:[%s4 + $0x18] sm:$0xf]
      %v2625 = vld [vmem:[%s4 + $0x1c] sm:$0xf]
      %v2626 = vld [vmem:[%s4 + $0x20] sm:$0xf]
      %v2627 = vld [vmem:[%s4 + $0x24] sm:$0xf]
      %v2628 = vld [vmem:[%s4 + $0x28] sm:$0xf]
      %v2629 = vld [vmem:[%s4 + $0x2c] sm:$0xf]
      %v2630 = vld [vmem:[%s4 + $0x30] sm:$0xf]
      %v2631 = vld [vmem:[%s4 + $0x34] sm:$0xf]
      %v2632 = vld [vmem:[%s4 + $0x38] sm:$0xf]
      %v2633 = vld [vmem:[%s4 + $0x3c] sm:$0xf]
      %v2634 = vld [vmem:[%s4 + $0x40] sm:$0xf]
      %v2635 = vld [vmem:[%s4 + $0x44] sm:$0xf]
      %v2642 = vrot.slane %v2612, 3
      %v2643 = vrot.slane %v2613, 3
      %v2644 = vrot.slane %v2614, 3
      %v2645 = vrot.slane %v2615, 3
      %v2646 = vrot.slane %v2616, 3
      %v2647 = vrot.slane %v2617, 3
      %vm2648 = vcmask 1040384
      %v2651 = vsel %vm2648, %v2612, %v2642
      %v2652 = vsel %vm1708, %v2612, %v2642
      %v2654 = vrot.slane %v2652, 1
      %v2655 = vsel %vm1710, %v2612, %v2642
      %v2657 = vrot.slane %v2655, 2
      %v2660 = vsel %vm2648, %v2613, %v2643
      %v2661 = vsel %vm1708, %v2613, %v2643
      %v2663 = vrot.slane %v2661, 1
      %v2664 = vsel %vm1710, %v2613, %v2643
      %v2666 = vrot.slane %v2664, 2
      %v2669 = vsel %vm2648, %v2614, %v2644
      %v2670 = vsel %vm1708, %v2614, %v2644
      %v2672 = vrot.slane %v2670, 1
      %v2673 = vsel %vm1710, %v2614, %v2644
      %v2675 = vrot.slane %v2673, 2
      %v2678 = vsel %vm2648, %v2615, %v2645
      %v2679 = vsel %vm1708, %v2615, %v2645
      %v2681 = vrot.slane %v2679, 1
      %v2682 = vsel %vm1710, %v2615, %v2645
      %v2684 = vrot.slane %v2682, 2
      %v2687 = vsel %vm2648, %v2616, %v2646
      %v2688 = vsel %vm1708, %v2616, %v2646
      %v2690 = vrot.slane %v2688, 1
      %v2691 = vsel %vm1710, %v2616, %v2646
      %v2693 = vrot.slane %v2691, 2
      %v2696 = vsel %vm2648, %v2617, %v2647
      %v2697 = vsel %vm1708, %v2617, %v2647
      %v2699 = vrot.slane %v2697, 1
      %v2700 = vsel %vm1710, %v2617, %v2647
      %v2702 = vrot.slane %v2700, 2
      %2703 = vst [vmem:[#allocation1] ss:$9 sm:$0xff] %v2651
      %s2705 = scalar_lea.vmem [#allocation1], 1
      %2706 = vst [vmem:[%s2705] ss:$9 sm:$0xff] %v2654
      %s2708 = scalar_lea.vmem [#allocation1], 2
      %2709 = vst [vmem:[%s2708] ss:$9 sm:$0xff] %v2657
      %s2710 = scalar_lea.vmem [#allocation1], 3
      %2711 = vst [vmem:[%s2710] ss:$9 sm:$0xff] %v2660
      %s2713 = scalar_lea.vmem [#allocation1], 4
      %2714 = vst [vmem:[%s2713] ss:$9 sm:$0xff] %v2663
      %s2716 = scalar_lea.vmem [#allocation1], 5
      %2717 = vst [vmem:[%s2716] ss:$9 sm:$0xff] %v2666
      %s2718 = scalar_lea.vmem [#allocation1], 6
      %2719 = vst [vmem:[%s2718] ss:$9 sm:$0xff] %v2669
      %s2721 = scalar_lea.vmem [#allocation1], 7
      %2722 = vst [vmem:[%s2721] ss:$9 sm:$0xff] %v2672
      %v2723 = vld [vmem:[#allocation1] sm:$0xff]
      %v2724 = vld [vmem:[#allocation1 + $0x9] sm:$0xff]
      %2726 = vst [vmem:[#allocation1] ss:$9 sm:$0xff] %v2675
      %2727 = vst [vmem:[%s2705] ss:$9 sm:$0xff] %v2678
      %2729 = vst [vmem:[%s2708] ss:$9 sm:$0xff] %v2681
      %2731 = vst [vmem:[%s2710] ss:$9 sm:$0xff] %v2684
      %2732 = vst [vmem:[%s2713] ss:$9 sm:$0xff] %v2687
      %2734 = vst [vmem:[%s2716] ss:$9 sm:$0xff] %v2690
      %2736 = vst [vmem:[%s2718] ss:$9 sm:$0xff] %v2693
      %2737 = vst [vmem:[%s2721] ss:$9 sm:$0xff] %v2696
      %v2738 = vld [vmem:[#allocation1] sm:$0xff]
      %v2739 = vld [vmem:[#allocation1 + $0x9] sm:$0xff]
      %2741 = vst [vmem:[#allocation1] ss:$9 sm:$0xff] %v2699
      %2743 = vst [vmem:[%s2705] ss:$9 sm:$0xff] %v2702
      %v2744 = vld [vmem:[#allocation1] sm:$0xff]
      %v2745 = vld [vmem:[#allocation1 + $0x9] sm:$0xff]
      %v2767 = vunpack.c.l.b16 %v2618
      %v2768 = vunpack.c.l.b16 %v2619
      %v2769 = vunpack.c.l.b16 %v2620
      %v2770 = vunpack.c.l.b16 %v2621
      %v2771 = vunpack.c.l.b16 %v2622
      %v2772 = vunpack.c.l.b16 %v2623
      %v2773 = vunpack.c.l.b16 %v2624
      %v2774 = vunpack.c.l.b16 %v2625
      %v2775 = vunpack.c.l.b16 %v2626
      %v2776 = vunpack.c.l.b16 %v2627
      %v2777 = vunpack.c.l.b16 %v2628
      %v2778 = vunpack.c.l.b16 %v2629
      %v2779 = vunpack.c.l.b16 %v2630
      %v2780 = vunpack.c.l.b16 %v2631
      %v2781 = vunpack.c.l.b16 %v2632
      %v2782 = vunpack.c.l.b16 %v2633
      %v2783 = vunpack.c.l.b16 %v2634
      %v2784 = vunpack.c.l.b16 %v2635
      %v2785 = vpack.c.b16 %v2768, %v2767
      %v2786 = vpack.c.b16 %v2770, %v2769
      %v2787 = vpack.c.b16 %v2772, %v2771
      %v2788 = vpack.c.b16 %v2774, %v2773
      %v2789 = vpack.c.b16 %v2776, %v2775
      %v2790 = vpack.c.b16 %v2778, %v2777
      %v2791 = vpack.c.b16 %v2780, %v2779
      %v2792 = vpack.c.b16 %v2782, %v2781
      %v2793 = vpack.c.b16 %v2784, %v2783
      %v2803 = vsel %vm2206, %v2724, 0
      %v2805 = vsel %vm2206, %v2739, 0
      %v2807 = vsel %vm2206, %v2745, 0
      %2809 = vmatpush.bf16.msra.mxu0 %v2792
      %2810 = vmatpush.bf16.msra.mxu0 %v2791
      %2811 = vmatpush.bf16.msra.mxu0 %v2790
      %2812 = vmatpush.bf16.msra.mxu0 %v2789
      %2813 = vmatpush.bf16.msra.mxu0 %v2788
      %2814 = vmatpush.bf16.msra.mxu0 %v2787
      %2815 = vmatpush.bf16.msra.mxu0 %v2786
      %2816 = vmatpush.bf16.msra.mxu0 %v2785
      %2817 = vmatmul.bf16.gmra.mxu0 %v2723
      %v2818 = vpop.f32.mrf.mxu0
      %v2819 = vadd.f32 0.0, %v2818
      %v2820 = vpop.f32.mrf.mxu0
      %v2821 = vadd.f32 0.0, %v2820
      %2822 = vmatmul.bf16.gmra.mxu0 %v2738
      %v2823 = vpop.f32.mrf.mxu0
      %v2824 = vadd.f32 0.0, %v2823
      %v2825 = vpop.f32.mrf.mxu0
      %v2826 = vadd.f32 0.0, %v2825
      %2827 = vmatmul.bf16.gmra.mxu0 %v2744
      %v2828 = vpop.f32.mrf.mxu0
      %v2829 = vadd.f32 0.0, %v2828
      %v2830 = vpop.f32.mrf.mxu0
      %2831 = vdwg.mxu0
      %2832 = vmatpush.bf16.msra.mxu0 0
      %2833 = vmatpush.bf16.msra.mxu0 0
      %2834 = vmatpush.bf16.msra.mxu0 0
      %2835 = vmatpush.bf16.msra.mxu0 0
      %2836 = vmatpush.bf16.msra.mxu0 0
      %2837 = vmatpush.bf16.msra.mxu0 0
      %2838 = vmatpush.bf16.msra.mxu0 0
      %2839 = vmatpush.bf16.msra.mxu0 %v2793
      %2840 = vmatmul.bf16.gmra.mxu0 %v2803
      %v2841 = vpop.f32.mrf.mxu0
      %v2842 = vadd.f32 %v2819, %v2841
      %v2843 = vpop.f32.mrf.mxu0
      %v2844 = vadd.f32 %v2821, %v2843
      %2845 = vmatmul.bf16.gmra.mxu0 %v2805
      %v2846 = vpop.f32.mrf.mxu0
      %v2847 = vadd.f32 %v2824, %v2846
      %v2848 = vpop.f32.mrf.mxu0
      %v2849 = vadd.f32 %v2826, %v2848
      %2850 = vmatmul.bf16.gmra.mxu0 %v2807
      %v2851 = vpop.f32.mrf.mxu0
      %v2852 = vadd.f32 %v2829, %v2851
      %v2853 = vpop.f32.mrf.mxu0
      %2854 = vdwg.mxu0
      %v2860 = vrot.slane %v2842, 2
      %v2861 = vrot.slane %v2842, 4
      %v2862 = vrot.slane %v2842, 6
      %v2863 = vrot.slane %v2844, 2
      %v2864 = vrot.slane %v2844, 4
      %v2865 = vrot.slane %v2844, 6
      %v2866 = vrot.slane %v2847, 2
      %v2867 = vrot.slane %v2847, 4
      %v2868 = vrot.slane %v2847, 6
      %v2869 = vrot.slane %v2849, 2
      %v2870 = vrot.slane %v2849, 4
      %v2871 = vrot.slane %v2849, 6
      %v2872 = vrot.slane %v2852, 2
      %v2886 = vld [vmem:[%s5] sm:$0x1]
      %v2888 = vperm.slane %v2886, 0
      %v2890 = vrot.slane %v2888, 2
      %v2891 = vrot.slane %v2888, 4
      %v2894 = vmul.f32 %v2842, %v2888
      %v2895 = vmul.f32 %v2860, %v2890
      %v2896 = vmul.f32 %v2861, %v2891
      %v2897 = vmul.f32 %v2862, %v2888
      %v2898 = vmul.f32 %v2844, %v2890
      %v2899 = vmul.f32 %v2863, %v2891
      %v2900 = vmul.f32 %v2864, %v2888
      %v2901 = vmul.f32 %v2865, %v2890
      %v2902 = vmul.f32 %v2847, %v2891
      %v2903 = vmul.f32 %v2866, %v2888
      %v2904 = vmul.f32 %v2867, %v2890
      %v2905 = vmul.f32 %v2868, %v2891
      %v2906 = vmul.f32 %v2849, %v2888
      %v2907 = vmul.f32 %v2869, %v2890
      %v2908 = vmul.f32 %v2870, %v2891
      %v2909 = vmul.f32 %v2871, %v2888
      %v2910 = vmul.f32 %v2852, %v2890
      %v2911 = vmul.f32 %v2872, %v2891
      %v2912 = vld [vmem:[%s6] sm:$0x1]
      %v2914 = vperm.slane %v2912, 0
      %v2916 = vrot.slane %v2914, 2
      %v2917 = vrot.slane %v2914, 4
      %v2920 = vadd.f32 %v2894, %v2914
      %v2921 = vadd.f32 %v2895, %v2916
      %v2922 = vadd.f32 %v2896, %v2917
      %v2923 = vadd.f32 %v2897, %v2914
      %v2924 = vadd.f32 %v2898, %v2916
      %v2925 = vadd.f32 %v2899, %v2917
      %v2926 = vadd.f32 %v2900, %v2914
      %v2927 = vadd.f32 %v2901, %v2916
      %v2928 = vadd.f32 %v2902, %v2917
      %v2929 = vadd.f32 %v2903, %v2914
      %v2930 = vadd.f32 %v2904, %v2916
      %v2931 = vadd.f32 %v2905, %v2917
      %v2932 = vadd.f32 %v2906, %v2914
      %v2933 = vadd.f32 %v2907, %v2916
      %v2934 = vadd.f32 %v2908, %v2917
      %v2935 = vadd.f32 %v2909, %v2914
      %v2936 = vadd.f32 %v2910, %v2916
      %v2937 = vadd.f32 %v2911, %v2917
      %v2938 = vmax.f32 %v2920, 0.0
      %v2939 = vmax.f32 %v2921, 0.0
      %v2940 = vmax.f32 %v2922, 0.0
      %v2941 = vmax.f32 %v2923, 0.0
      %v2942 = vmax.f32 %v2924, 0.0
      %v2943 = vmax.f32 %v2925, 0.0
      %v2944 = vmax.f32 %v2926, 0.0
      %v2945 = vmax.f32 %v2927, 0.0
      %v2946 = vmax.f32 %v2928, 0.0
      %v2947 = vmax.f32 %v2929, 0.0
      %v2948 = vmax.f32 %v2930, 0.0
      %v2949 = vmax.f32 %v2931, 0.0
      %v2950 = vmax.f32 %v2932, 0.0
      %v2951 = vmax.f32 %v2933, 0.0
      %v2952 = vmax.f32 %v2934, 0.0
      %v2953 = vmax.f32 %v2935, 0.0
      %v2954 = vmax.f32 %v2936, 0.0
      %v2955 = vmax.f32 %v2937, 0.0
      %2974 = vst [vmem:[#allocation1] ss:$4 sm:$0xff] %v2938
      %s2975 = scalar_lea.vmem [#allocation1], 1
      %2976 = vst [vmem:[%s2975] ss:$4 sm:$0xff] %v2939
      %s2977 = scalar_lea.vmem [#allocation1], 2
      %2978 = vst [vmem:[%s2977] ss:$4 sm:$0xff] %v2940
      %v2979 = vld.sshfl [vmem:[#allocation1] sm:$0xff pattern:$0x73625140]
      %s2980 = scalar_lea.vmem [#allocation1], 32
      %2981 = vst [vmem:[%s2980] ss:$4 sm:$0xff] %v2941
      %s2982 = scalar_lea.vmem [#allocation1], 33
      %2983 = vst [vmem:[%s2982] ss:$4 sm:$0xff] %v2942
      %s2984 = scalar_lea.vmem [#allocation1], 34
      %2985 = vst [vmem:[%s2984] ss:$4 sm:$0xff] %v2943
      %v2986 = vld.sshfl [vmem:[#allocation1 + $0x20] sm:$0xff pattern:$0x73625140]
      %2987 = vst [vmem:[#allocation1] ss:$4 sm:$0xff] %v2944
      %2988 = vst [vmem:[%s2975] ss:$4 sm:$0xff] %v2945
      %2989 = vst [vmem:[%s2977] ss:$4 sm:$0xff] %v2946
      %v2990 = vld.sshfl [vmem:[#allocation1] sm:$0xff pattern:$0x73625140]
      %2991 = vst [vmem:[%s2980] ss:$4 sm:$0xff] %v2947
      %2992 = vst [vmem:[%s2982] ss:$4 sm:$0xff] %v2948
      %2993 = vst [vmem:[%s2984] ss:$4 sm:$0xff] %v2949
      %v2994 = vld.sshfl [vmem:[#allocation1 + $0x20] sm:$0xff pattern:$0x73625140]
      %2995 = vst [vmem:[#allocation1] ss:$4 sm:$0xff] %v2950
      %2996 = vst [vmem:[%s2975] ss:$4 sm:$0xff] %v2951
      %2997 = vst [vmem:[%s2977] ss:$4 sm:$0xff] %v2952
      %v2998 = vld.sshfl [vmem:[#allocation1] sm:$0xff pattern:$0x73625140]
      %2999 = vst [vmem:[%s2980] ss:$4 sm:$0xff] %v2953
      %3000 = vst [vmem:[%s2982] ss:$4 sm:$0xff] %v2954
      %3001 = vst [vmem:[%s2984] ss:$4 sm:$0xff] %v2955
      %v3002 = vld.sshfl [vmem:[#allocation1 + $0x20] sm:$0xff pattern:$0x73625140]
      %vm3009 = vcmask 128000
      %3010 = vst.msk [vmem:[%s278] sm:$0x3f] %vm3009, %v2979
      %3011 = vst.msk [vmem:[%s278 + $0x8] sm:$0x3f] %vm3009, %v2986
      %3012 = vst.msk [vmem:[%s278 + $0x10] sm:$0x3f] %vm3009, %v2990
      %3013 = vst.msk [vmem:[%s278 + $0x18] sm:$0x3f] %vm3009, %v2994
      %3014 = vst.msk [vmem:[%s278 + $0x20] sm:$0x3f] %vm3009, %v2998
      %3015 = vst.msk [vmem:[%s278 + $0x28] sm:$0x3f] %vm3009, %v3002
      %p3016 = scmp.lt.s32.totalorder %s18, 1
      %s3017 = scalar_select %p3016, %s18, 1
      %s3018 = smul.addr %s3017, 6
      %s3019 = smul.addr %s3018, 8
      %s3020 = scalar_lea.vmem %s7, %s3019
      // Predicated region
      $region49: #{tpu_custom_call.1} parent=47 // pred_check
        %p3021 = pneg %p188
      $region50: #{tpu_custom_call.1} parent=47 // pred_check_branch
        %3023 = sbr.rel (%p3021) target = $region52
      $region51: #{tpu_custom_call.1} parent=47 // pred_region
        _
      $region52: #{tpu_custom_call.1} parent=47 // pred_fallthru
        _
    $region48: #{tpu_custom_call.1} parent=5 // pred_fallthru
      _
    %p3024 = scmp.le.s32.totalorder 2, %s13
    // Predicated region
    $region53: #{tpu_custom_call.1} parent=5 // pred_check
      %p3025 = pneg %p3024
    $region54: #{tpu_custom_call.1} parent=5 // pred_check_branch
      %3027 = sbr.rel (%p3025) target = $region56
    $region55: #{tpu_custom_call.1} parent=5 // pred_region
      %s3028 = ssub.s32 %s13, 2
      // Predicated region
      $region57: #{tpu_custom_call.1} parent=55 // pred_check
        %p3029 = pneg %p194
      $region58: #{tpu_custom_call.1} parent=55 // pred_check_branch
        %3031 = sbr.rel (%p3029) target = $region60
      $region59: #{tpu_custom_call.1} parent=55 // pred_region
        %p3032 = scmp.lt.s32.totalorder %s19, 1
        %s3033 = scalar_select %p3032, %s19, 1
        %s3034 = smul.addr %s3033, 6
        %s3035 = smul.addr %s3034, 8
        %s3036 = scalar_lea.vmem %s7, %s3035
      $region60: #{tpu_custom_call.1} parent=55 // pred_fallthru
        _
    $region56: #{tpu_custom_call.1} parent=5 // pred_fallthru
      _
  $region6: #{tpu_custom_call.1} parent=0 // loop_footer
    %s17 = sadd.s32 1, %s13
  $region7: #{tpu_custom_call.1} parent=0 // loop_footer_branch
    %12 = sbr.rel target = $region3
  $region8: #{tpu_custom_call.1} parent=0 // loop_exit
    _

</llo_original>
